<compile_context>
chip_gen: v5e
topology: v5e:2x2
jax: 0.10.0
libtpu: 0.0.40
codegen_flags: <defaults>
</compile_context>

<pallas_src>
import jax
import jax.numpy as jnp
from jax.experimental import pallas as pl
from jax.experimental.pallas import tpu as pltpu


def _round_up(x, m):
    return ((x + m - 1) // m) * m


def _pick_tile(dim, target, multiple):
    return min(target, _round_up(dim, multiple))


def _fused_gemm_bn_silu_kernel(a_ref, b_ref, scale_ref, shift_ref, o_ref, acc_ref):
    """out = silu((A @ B) * scale + shift), accumulated over the K grid axis."""

    @pl.when(pl.program_id(2) == 0)
    def _():
        acc_ref[...] = jnp.zeros_like(acc_ref)

    acc_ref[...] += jnp.dot(
        a_ref[...], b_ref[...], preferred_element_type=jnp.float32
    )

    @pl.when(pl.program_id(2) == pl.num_programs(2) - 1)
    def _():
        y = acc_ref[...] * scale_ref[...] + shift_ref[...]   # folded BatchNorm
        y = y * jax.nn.sigmoid(y)                            # SiLU / Swish
        o_ref[...] = y.astype(o_ref.dtype)


def _fused_gemm_bn_silu(a, b, scale, shift, out_dtype, *, tm=512, tn=256, tk=256):
    """silu((a @ b) * scale + shift) with BN + activation fused in the epilogue."""
    M, K = a.shape
    K2, O = b.shape
    assert K == K2

    tm = _pick_tile(M, tm, 8)
    tn = _pick_tile(O, tn, 128)
    tk = _pick_tile(K, tk, 128)

    Mp, Kp, Op = _round_up(M, tm), _round_up(K, tk), _round_up(O, tn)

    if (Mp, Kp) != (M, K):
        a = jnp.pad(a, ((0, Mp - M), (0, Kp - K)))
    if (Kp, Op) != (K, O):
        b = jnp.pad(b, ((0, Kp - K), (0, Op - O)))
    if Op != O:
        scale = jnp.pad(scale, (0, Op - O))
        shift = jnp.pad(shift, (0, Op - O))
    scale2d = scale.reshape(1, Op).astype(jnp.float32)
    shift2d = shift.reshape(1, Op).astype(jnp.float32)

    grid = (Mp // tm, Op // tn, Kp // tk)

    out = pl.pallas_call(
        _fused_gemm_bn_silu_kernel,
        out_shape=jax.ShapeDtypeStruct((Mp, Op), out_dtype),
        grid_spec=pltpu.PrefetchScalarGridSpec(
            num_scalar_prefetch=0,
            grid=grid,
            in_specs=[
                pl.BlockSpec((tm, tk), lambda i, j, k: (i, k)),   # patches
                pl.BlockSpec((tk, tn), lambda i, j, k: (k, j)),   # weights
                pl.BlockSpec((1, tn), lambda i, j, k: (0, j)),    # BN scale
                pl.BlockSpec((1, tn), lambda i, j, k: (0, j)),    # BN shift
            ],
            out_specs=pl.BlockSpec((tm, tn), lambda i, j, k: (i, j)),
            scratch_shapes=[pltpu.VMEM((tm, tn), jnp.float32)],
        ),
        compiler_params=pltpu.CompilerParams(
            dimension_semantics=("parallel", "parallel", "arbitrary"),
        ),
    )(a, b, scale2d, shift2d)

    return out[:M, :O]


def _im2col(x, kh, kw, stride, pad_h, pad_w):
    """x: (N, C, H, W) -> patches (N*OH*OW, C*kh*kw), K ordered (c, kh, kw)."""
    N, C, H, W = x.shape
    OH = (H + 2 * pad_h - kh) // stride + 1
    OW = (W + 2 * pad_w - kw) // stride + 1
    xp = jnp.pad(x, ((0, 0), (0, 0), (pad_h, pad_h), (pad_w, pad_w)))
    cols = []
    for i in range(kh):
        for j in range(kw):
            cols.append(
                xp[:, :,
                   i:i + stride * (OH - 1) + 1:stride,
                   j:j + stride * (OW - 1) + 1:stride])
    p = jnp.stack(cols, axis=0).reshape(kh, kw, N, C, OH, OW)
    p = p.transpose(2, 4, 5, 3, 0, 1).reshape(N * OH * OW, C * kh * kw)
    return p, OH, OW


def conv_bn_act(x, w, gamma, beta, mean, var, *, stride=1, groups=1,
                bias=None, eps=1e-5):
    """ConvBNAct forward: Conv2d (same padding) -> folded BatchNorm -> SiLU.

    x: (N, Cin, H, W) NCHW; w: (Cout, Cin // groups, kh, kw) OIHW.
    gamma/beta/mean/var: (Cout,) BatchNorm parameters / running stats.
    """
    N, Cin, H, W = x.shape
    Cout, Cin_g, kh, kw = w.shape
    assert Cin == Cin_g * groups and Cout % groups == 0
    pad_h, pad_w = (kh - 1) // 2, (kw - 1) // 2   # matches pad = (ksize-1)//2

    scale = (gamma / jnp.sqrt(var + eps)).astype(jnp.float32)
    if bias is None:
        shift = beta - mean * scale
    else:
        shift = beta + (bias - mean) * scale
    shift = shift.astype(jnp.float32)

    Cout_g = Cout // groups
    outs = []
    OH = OW = None
    for g in range(groups):
        xg = x[:, g * Cin_g:(g + 1) * Cin_g]
        wg = w[g * Cout_g:(g + 1) * Cout_g]
        a, OH, OW = _im2col(xg, kh, kw, stride, pad_h, pad_w)     # (M, K)
        bmat = wg.reshape(Cout_g, Cin_g * kh * kw).T              # (K, Cout_g)
        sg = scale[g * Cout_g:(g + 1) * Cout_g]
        hg = shift[g * Cout_g:(g + 1) * Cout_g]
        outs.append(_fused_gemm_bn_silu(a, bmat, sg, hg, x.dtype))
    y = jnp.concatenate(outs, axis=-1) if groups > 1 else outs[0]  # (M, Cout)
    return y.reshape(N, OH, OW, Cout).transpose(0, 3, 1, 2)        # NCHW


def _reference(x, w, gamma, beta, mean, var, *, stride, groups, bias=None, eps=1e-5):
    kh, kw = w.shape[2], w.shape[3]
    pad_h, pad_w = (kh - 1) // 2, (kw - 1) // 2
    y = jax.lax.conv_general_dilated(
        x, w, window_strides=(stride, stride),
        padding=[(pad_h, pad_h), (pad_w, pad_w)],
        dimension_numbers=("NCHW", "OIHW", "NCHW"),
        feature_group_count=groups)
    if bias is not None:
        y = y + bias[None, :, None, None]
    scale = gamma / jnp.sqrt(var + eps)
    shift = beta - mean * scale
    y = y * scale[None, :, None, None] + shift[None, :, None, None]
    return y * jax.nn.sigmoid(y)


if __name__ == "__main__":
    key = jax.random.PRNGKey(0)
    k = jax.random.split(key, 8)

    # Small ConvBNAct config: in=4, out=8, ksize=3, stride=1, groups=1, silu.
    N, Cin, H, W = 2, 4, 16, 16
    Cout, ksize = 8, 3

    x = jax.random.normal(k[0], (N, Cin, H, W), dtype=jnp.float32)
    w = jax.random.normal(k[1], (Cout, Cin, ksize, ksize), jnp.float32) * 0.1
    gamma = 1.0 + 0.1 * jax.random.normal(k[2], (Cout,), jnp.float32)
    beta = 0.1 * jax.random.normal(k[3], (Cout,), jnp.float32)
    mean = 0.1 * jax.random.normal(k[4], (Cout,), jnp.float32)
    var = jax.random.uniform(k[5], (Cout,), jnp.float32, 0.5, 1.5)

    y = conv_bn_act(x, w, gamma, beta, mean, var, stride=1, groups=1)
    jax.block_until_ready(y)
    y_ref = _reference(x, w, gamma, beta, mean, var, stride=1, groups=1)
    assert y.shape == y_ref.shape
    assert jnp.allclose(y, y_ref, atol=1e-4, rtol=1e-4), "stride=1 mismatch"

    # Strided variant (stride=2, more output channels).
    Cout2 = 16
    w2 = jax.random.normal(k[6], (Cout2, Cin, ksize, ksize), jnp.float32) * 0.1
    g2 = jnp.ones((Cout2,), jnp.float32)
    b2 = jnp.zeros((Cout2,), jnp.float32)
    m2 = jnp.zeros((Cout2,), jnp.float32)
    v2 = jnp.ones((Cout2,), jnp.float32)
    y2 = conv_bn_act(x, w2, g2, b2, m2, v2, stride=2, groups=1)
    jax.block_until_ready(y2)
    y2_ref = _reference(x, w2, g2, b2, m2, v2, stride=2, groups=1)
    assert jnp.allclose(y2, y2_ref, atol=1e-4, rtol=1e-4), "stride=2 mismatch"

    # Grouped-conv variant (groups=2).
    wg = jax.random.normal(k[7], (Cout, Cin // 2, ksize, ksize), jnp.float32) * 0.1
    yg = conv_bn_act(x, wg, gamma, beta, mean, var, stride=1, groups=2)
    jax.block_until_ready(yg)
    yg_ref = _reference(x, wg, gamma, beta, mean, var, stride=1, groups=2)
    assert jnp.allclose(yg, yg_ref, atol=1e-4, rtol=1e-4), "groups=2 mismatch"

    print("KERNEL_OK")
</pallas_src>

<mosaic_0001>
module attributes {stable_mosaic.version = 11 : i64} {
  func.func @_fused_gemm_bn_silu_kernel(%arg0: i32, %arg1: i32, %arg2: i32, %arg3: memref<512x128xf32, #tpu.memory_space<vmem>>, %arg4: memref<128x128xf32, #tpu.memory_space<vmem>>, %arg5: memref<1x128xf32, #tpu.memory_space<vmem>>, %arg6: memref<1x128xf32, #tpu.memory_space<vmem>>, %arg7: memref<512x128xf32, #tpu.memory_space<vmem>>, %arg8: memref<512x128xf32, #tpu.memory_space<vmem>>) attributes {dimension_semantics = [#tpu.dimension_semantics<parallel>, #tpu.dimension_semantics<parallel>, #tpu.dimension_semantics<arbitrary>], iteration_bounds = array<i64: 1, 1, 1>, scalar_prefetch = 0 : i64, scratch_operands = 1 : i64, tpu.core_type = #tpu.core_type<tc>, window_params = [{transform_indices = @transform_0, window_bounds = array<i64: 512, 128>}, {transform_indices = @transform_1, window_bounds = array<i64: 128, 128>}, {transform_indices = @transform_2, window_bounds = array<i64: 1, 128>}, {transform_indices = @transform_3, window_bounds = array<i64: 1, 128>}, {transform_indices = @transform_4, window_bounds = array<i64: 512, 128>}]} {
    %c0_i32 = arith.constant 0 : i32
    %0 = arith.cmpi eq, %arg2, %c0_i32 : i32
    %1 = arith.extui %0 : i1 to i32
    %c0_i32_0 = arith.constant 0 : i32
    %2 = arith.cmpi ne, %1, %c0_i32_0 : i32
    scf.if %2 {
      %cst_10 = arith.constant 0.000000e+00 : f32
      %12 = vector.broadcast %cst_10 : f32 to vector<512x128xf32>
      %c0_11 = arith.constant 0 : index
      %c0_12 = arith.constant 0 : index
      %13 = vector.load %arg8[%c0_11, %c0_12] : memref<512x128xf32, #tpu.memory_space<vmem>>, vector<512x128xf32>
      tpu.vector_store %arg8[%c0_11, %c0_12], %12 {strides = array<i32>} : memref<512x128xf32, #tpu.memory_space<vmem>>, vector<512x128xf32>,
    } else {
    }
    %c0 = arith.constant 0 : index
    %c0_1 = arith.constant 0 : index
    %3 = vector.load %arg8[%c0, %c0_1] : memref<512x128xf32, #tpu.memory_space<vmem>>, vector<512x128xf32>
    %c0_2 = arith.constant 0 : index
    %c0_3 = arith.constant 0 : index
    %4 = vector.load %arg3[%c0_2, %c0_3] : memref<512x128xf32, #tpu.memory_space<vmem>>, vector<512x128xf32>
    %c0_4 = arith.constant 0 : index
    %c0_5 = arith.constant 0 : index
    %5 = vector.load %arg4[%c0_4, %c0_5] : memref<128x128xf32, #tpu.memory_space<vmem>>, vector<128x128xf32>
    %cst = arith.constant dense<0.000000e+00> : vector<512x128xf32>
    %6 = tpu.matmul %4, %5, %cst {dimension_numbers = #tpu.dot_dimension_numbers<[1], [0], [0], [1], [0, 0, 1, 1], [], []>} : vector<512x128xf32>, vector<128x128xf32>, vector<512x128xf32> -> vector<512x128xf32>
    %7 = arith.addf %3, %6 : vector<512x128xf32>
    %c0_6 = arith.constant 0 : index
    %c0_7 = arith.constant 0 : index
    %8 = vector.load %arg8[%c0_6, %c0_7] : memref<512x128xf32, #tpu.memory_space<vmem>>, vector<512x128xf32>
    tpu.vector_store %arg8[%c0_6, %c0_7], %7 {strides = array<i32>} : memref<512x128xf32, #tpu.memory_space<vmem>>, vector<512x128xf32>,
    %c0_i32_8 = arith.constant 0 : i32
    %9 = arith.cmpi eq, %arg2, %c0_i32_8 : i32
    %10 = arith.extui %9 : i1 to i32
    %c0_i32_9 = arith.constant 0 : i32
    %11 = arith.cmpi ne, %10, %c0_i32_9 : i32
    scf.if %11 {
      %c0_10 = arith.constant 0 : index
      %c0_11 = arith.constant 0 : index
      %12 = vector.load %arg8[%c0_10, %c0_11] : memref<512x128xf32, #tpu.memory_space<vmem>>, vector<512x128xf32>
      %c0_12 = arith.constant 0 : index
      %c0_13 = arith.constant 0 : index
      %13 = vector.load %arg5[%c0_12, %c0_13] : memref<1x128xf32, #tpu.memory_space<vmem>>, vector<1x128xf32>
      %14 = vector.broadcast %13 : vector<1x128xf32> to vector<512x128xf32>
      %15 = arith.mulf %12, %14 : vector<512x128xf32>
      %c0_14 = arith.constant 0 : index
      %c0_15 = arith.constant 0 : index
      %16 = vector.load %arg6[%c0_14, %c0_15] : memref<1x128xf32, #tpu.memory_space<vmem>>, vector<1x128xf32>
      %17 = vector.broadcast %16 : vector<1x128xf32> to vector<512x128xf32>
      %18 = arith.addf %15, %17 : vector<512x128xf32>
      %19 = arith.negf %18 : vector<512x128xf32>
      %20 = math.exp %19 : vector<512x128xf32>
      %cst_16 = arith.constant 1.000000e+00 : f32
      %21 = vector.broadcast %cst_16 : f32 to vector<512x128xf32>
      %22 = arith.addf %21, %20 : vector<512x128xf32>
      %23 = arith.divf %21, %22 : vector<512x128xf32>
      %24 = arith.mulf %18, %23 : vector<512x128xf32>
      %c0_17 = arith.constant 0 : index
      %c0_18 = arith.constant 0 : index
      %25 = vector.load %arg7[%c0_17, %c0_18] : memref<512x128xf32, #tpu.memory_space<vmem>>, vector<512x128xf32>
      tpu.vector_store %arg7[%c0_17, %c0_18], %24 {strides = array<i32>} : memref<512x128xf32, #tpu.memory_space<vmem>>, vector<512x128xf32>,
    } else {
    }
    return
  }
  func.func @transform_0(%arg0: i32, %arg1: i32, %arg2: i32) -> (i32, i32) {
    %c0_i32 = arith.constant 0 : i32
    return %arg0, %arg2 : i32, i32
  }
  func.func @transform_1(%arg0: i32, %arg1: i32, %arg2: i32) -> (i32, i32) {
    %c0_i32 = arith.constant 0 : i32
    return %arg2, %arg1 : i32, i32
  }
  func.func @transform_2(%arg0: i32, %arg1: i32, %arg2: i32) -> (i32, i32) {
    %c0_i32 = arith.constant 0 : i32
    %c0_i32_0 = arith.constant 0 : i32
    return %c0_i32, %arg1 : i32, i32
  }
  func.func @transform_3(%arg0: i32, %arg1: i32, %arg2: i32) -> (i32, i32) {
    %c0_i32 = arith.constant 0 : i32
    %c0_i32_0 = arith.constant 0 : i32
    return %c0_i32, %arg1 : i32, i32
  }
  func.func @transform_4(%arg0: i32, %arg1: i32, %arg2: i32) -> (i32, i32) {
    %c0_i32 = arith.constant 0 : i32
    return %arg0, %arg1 : i32, i32
  }
}

</mosaic_0001>

<llo_original>
// kernel: tpu_custom_call.1
$region0: #{tpu_custom_call.1}
  #allocation0 [shape = 'u32[]', space=smem, size = 0x4, offset = 0x4, fixed_abs, tag = 'smem constant byte address 0x4 - core index']
  #allocation1 [shape = 'u32[72,128]{1,0:T(1,128)}', space=vmem, size = 0x9000, scoped, tag = 'internal scratch']
  #allocation2 [shape = 'f32[512,128]{1,0:T(8,128)}', space=vmem, size = 0x40000, scoped, tag = 'scratch operand']
  %s0 = inlined_call_operand.hbm [shape: f32[512,128], index: 0, kind: input, shape index: {}]
  %s1 = inlined_call_operand.hbm [shape: f32[128,128], index: 1, kind: input, shape index: {}]
  %s2 = inlined_call_operand.vmem [shape: f32[1,128], index: 2, kind: input, shape index: {}]
  %s3 = inlined_call_operand.vmem [shape: f32[1,128], index: 3, kind: input, shape index: {}]
  %s4 = inlined_call_operand.hbm [shape: f32[512,128], index: 4, kind: output, shape index: {}]
  %s5 = sld [smem:[#allocation0]]
  $region42: #{tpu_custom_call.1} parent=0
    _
  %s7 = ssub.s32 1, %s5
  %s8 = scalar_select 0, %s7, %s5
  $region1: #{tpu_custom_call.1} parent=0
    #allocation3 [shape = 'u8[262144]{0}', space=vmem, size = 0x40000, scoped, tag = 'input window, operand 0, single buffered']
    #allocation4 [shape = 's32[1]{0}', space=sflag, size = 0x4, scoped, tag = 'scoped memory for tpu_custom_call.1']
    #allocation5 [shape = 's32[1]{0}', space=sflag, size = 0x4, scoped, tag = 'scoped memory for tpu_custom_call.1']
    #allocation6 [shape = 'u8[65536]{0}', space=vmem, size = 0x10000, scoped, tag = 'input window, operand 1, single buffered']
    #allocation7 [shape = 's32[1]{0}', space=sflag, size = 0x4, scoped, tag = 'scoped memory for tpu_custom_call.1']
    #allocation8 [shape = 'u8[262144]{0}', space=vmem, size = 0x40000, scoped, tag = 'output window, operand 0, single buffered']
    %9 = vsyncpa [#allocation4], 0
    %10 = vsyncpa [#allocation7], 0
    %11 = vsyncpa [#allocation5], 0
    // Predicated region
    $region2: #{tpu_custom_call.1} parent=1 // pred_check
      _
    $region3: #{tpu_custom_call.1} parent=1 // pred_check_branch
      %13 = sbr.rel (0) target = $region5
    $region4: #{tpu_custom_call.1} parent=1 // pred_region
      %15 = vsyncadd [#allocation4], 0
      %s16 = sshll.u32 %s0, 4
      %s17 = int_to_ptr.hbm [resolvable:$true] %s16
      %s18 = sshll.u32 [#allocation3], 4
      %s19 = int_to_ptr.vmem [resolvable:$true] %s18
      %24 = dma.hbm_to_vmem [thread:$0]  %s17, 8192, %s19, [#allocation4], 128, 128, 8
    $region5: #{tpu_custom_call.1} parent=1 // pred_fallthru
      _
    // Predicated region
    $region6: #{tpu_custom_call.1} parent=1 // pred_check
      _
    $region7: #{tpu_custom_call.1} parent=1 // pred_check_branch
      %26 = sbr.rel (0) target = $region9
    $region8: #{tpu_custom_call.1} parent=1 // pred_region
      %28 = vsyncadd [#allocation7], 0
      %s29 = sshll.u32 %s1, 4
      %s30 = int_to_ptr.hbm [resolvable:$true] %s29
      %s31 = sshll.u32 [#allocation6], 4
      %s32 = int_to_ptr.vmem [resolvable:$true] %s31
      %37 = dma.hbm_to_vmem [thread:$0]  %s30, 2048, %s32, [#allocation7], 128, 128, 8
    $region9: #{tpu_custom_call.1} parent=1 // pred_fallthru
      _
    // Predicated region
    $region10: #{tpu_custom_call.1} parent=1 // pred_check
      _
    $region11: #{tpu_custom_call.1} parent=1 // pred_check_branch
      %39 = sbr.rel (0) target = $region13
    $region12: #{tpu_custom_call.1} parent=1 // pred_region
      _
    $region13: #{tpu_custom_call.1} parent=1 // pred_fallthru
      _
    // Predicated region
    $region14: #{tpu_custom_call.1} parent=1 // pred_check
      _
    $region15: #{tpu_custom_call.1} parent=1 // pred_check_branch
      %41 = sbr.rel (0) target = $region17
    $region16: #{tpu_custom_call.1} parent=1 // pred_region
      _
    $region17: #{tpu_custom_call.1} parent=1 // pred_fallthru
      _
    // Predicated region
    $region18: #{tpu_custom_call.1} parent=1 // pred_check
      _
    $region19: #{tpu_custom_call.1} parent=1 // pred_check_branch
      %43 = sbr.rel (0) target = $region21
    $region20: #{tpu_custom_call.1} parent=1 // pred_region
      %45 = dma.done [#allocation4], 8192
    $region21: #{tpu_custom_call.1} parent=1 // pred_fallthru
      _
    // Predicated region
    $region22: #{tpu_custom_call.1} parent=1 // pred_check
      _
    $region23: #{tpu_custom_call.1} parent=1 // pred_check_branch
      %47 = sbr.rel (0) target = $region25
    $region24: #{tpu_custom_call.1} parent=1 // pred_region
      %49 = dma.done [#allocation7], 2048
    $region25: #{tpu_custom_call.1} parent=1 // pred_fallthru
      _
    %p50 = scmp.eq.s32.totalorder 0, 0
    // Predicated region
    $region26: #{tpu_custom_call.1} parent=1 // pred_check
      %p51 = pneg %p50
    $region27: #{tpu_custom_call.1} parent=1 // pred_check_branch
      %53 = sbr.rel (%p51) target = $region29
    $region28: #{tpu_custom_call.1} parent=1 // pred_region
      %54 = vst [vmem:[#allocation2] sm:$0xff] 0.0
      %55 = vst [vmem:[#allocation2 + $0x8] sm:$0xff] 0.0
      %56 = vst [vmem:[#allocation2 + $0x10] sm:$0xff] 0.0
      %57 = vst [vmem:[#allocation2 + $0x18] sm:$0xff] 0.0
      %58 = vst [vmem:[#allocation2 + $0x20] sm:$0xff] 0.0
      %59 = vst [vmem:[#allocation2 + $0x28] sm:$0xff] 0.0
      %60 = vst [vmem:[#allocation2 + $0x30] sm:$0xff] 0.0
      %61 = vst [vmem:[#allocation2 + $0x38] sm:$0xff] 0.0
      %62 = vst [vmem:[#allocation2 + $0x40] sm:$0xff] 0.0
      %63 = vst [vmem:[#allocation2 + $0x48] sm:$0xff] 0.0
      %64 = vst [vmem:[#allocation2 + $0x50] sm:$0xff] 0.0
      %65 = vst [vmem:[#allocation2 + $0x58] sm:$0xff] 0.0
      %66 = vst [vmem:[#allocation2 + $0x60] sm:$0xff] 0.0
      %67 = vst [vmem:[#allocation2 + $0x68] sm:$0xff] 0.0
      %68 = vst [vmem:[#allocation2 + $0x70] sm:$0xff] 0.0
      %69 = vst [vmem:[#allocation2 + $0x78] sm:$0xff] 0.0
      %70 = vst [vmem:[#allocation2 + $0x80] sm:$0xff] 0.0
      %71 = vst [vmem:[#allocation2 + $0x88] sm:$0xff] 0.0
      %72 = vst [vmem:[#allocation2 + $0x90] sm:$0xff] 0.0
      %73 = vst [vmem:[#allocation2 + $0x98] sm:$0xff] 0.0
      %74 = vst [vmem:[#allocation2 + $0xa0] sm:$0xff] 0.0
      %75 = vst [vmem:[#allocation2 + $0xa8] sm:$0xff] 0.0
      %76 = vst [vmem:[#allocation2 + $0xb0] sm:$0xff] 0.0
      %77 = vst [vmem:[#allocation2 + $0xb8] sm:$0xff] 0.0
      %78 = vst [vmem:[#allocation2 + $0xc0] sm:$0xff] 0.0
      %79 = vst [vmem:[#allocation2 + $0xc8] sm:$0xff] 0.0
      %80 = vst [vmem:[#allocation2 + $0xd0] sm:$0xff] 0.0
      %81 = vst [vmem:[#allocation2 + $0xd8] sm:$0xff] 0.0
      %82 = vst [vmem:[#allocation2 + $0xe0] sm:$0xff] 0.0
      %83 = vst [vmem:[#allocation2 + $0xe8] sm:$0xff] 0.0
      %84 = vst [vmem:[#allocation2 + $0xf0] sm:$0xff] 0.0
      %85 = vst [vmem:[#allocation2 + $0xf8] sm:$0xff] 0.0
      %86 = vst [vmem:[#allocation2 + $0x100] sm:$0xff] 0.0
      %87 = vst [vmem:[#allocation2 + $0x108] sm:$0xff] 0.0
      %88 = vst [vmem:[#allocation2 + $0x110] sm:$0xff] 0.0
      %89 = vst [vmem:[#allocation2 + $0x118] sm:$0xff] 0.0
      %90 = vst [vmem:[#allocation2 + $0x120] sm:$0xff] 0.0
      %91 = vst [vmem:[#allocation2 + $0x128] sm:$0xff] 0.0
      %92 = vst [vmem:[#allocation2 + $0x130] sm:$0xff] 0.0
      %93 = vst [vmem:[#allocation2 + $0x138] sm:$0xff] 0.0
      %94 = vst [vmem:[#allocation2 + $0x140] sm:$0xff] 0.0
      %95 = vst [vmem:[#allocation2 + $0x148] sm:$0xff] 0.0
      %96 = vst [vmem:[#allocation2 + $0x150] sm:$0xff] 0.0
      %97 = vst [vmem:[#allocation2 + $0x158] sm:$0xff] 0.0
      %98 = vst [vmem:[#allocation2 + $0x160] sm:$0xff] 0.0
      %99 = vst [vmem:[#allocation2 + $0x168] sm:$0xff] 0.0
      %100 = vst [vmem:[#allocation2 + $0x170] sm:$0xff] 0.0
      %101 = vst [vmem:[#allocation2 + $0x178] sm:$0xff] 0.0
      %102 = vst [vmem:[#allocation2 + $0x180] sm:$0xff] 0.0
      %103 = vst [vmem:[#allocation2 + $0x188] sm:$0xff] 0.0
      %104 = vst [vmem:[#allocation2 + $0x190] sm:$0xff] 0.0
      %105 = vst [vmem:[#allocation2 + $0x198] sm:$0xff] 0.0
      %106 = vst [vmem:[#allocation2 + $0x1a0] sm:$0xff] 0.0
      %107 = vst [vmem:[#allocation2 + $0x1a8] sm:$0xff] 0.0
      %108 = vst [vmem:[#allocation2 + $0x1b0] sm:$0xff] 0.0
      %109 = vst [vmem:[#allocation2 + $0x1b8] sm:$0xff] 0.0
      %110 = vst [vmem:[#allocation2 + $0x1c0] sm:$0xff] 0.0
      %111 = vst [vmem:[#allocation2 + $0x1c8] sm:$0xff] 0.0
      %112 = vst [vmem:[#allocation2 + $0x1d0] sm:$0xff] 0.0
      %113 = vst [vmem:[#allocation2 + $0x1d8] sm:$0xff] 0.0
      %114 = vst [vmem:[#allocation2 + $0x1e0] sm:$0xff] 0.0
      %115 = vst [vmem:[#allocation2 + $0x1e8] sm:$0xff] 0.0
      %116 = vst [vmem:[#allocation2 + $0x1f0] sm:$0xff] 0.0
      %117 = vst [vmem:[#allocation2 + $0x1f8] sm:$0xff] 0.0
    $region29: #{tpu_custom_call.1} parent=1 // pred_fallthru
      _
    %v118 = vld [vmem:[#allocation2] sm:$0xff]
    %v119 = vld [vmem:[#allocation2 + $0x8] sm:$0xff]
    %v120 = vld [vmem:[#allocation2 + $0x10] sm:$0xff]
    %v121 = vld [vmem:[#allocation2 + $0x18] sm:$0xff]
    %v122 = vld [vmem:[#allocation2 + $0x20] sm:$0xff]
    %v123 = vld [vmem:[#allocation2 + $0x28] sm:$0xff]
    %v124 = vld [vmem:[#allocation2 + $0x30] sm:$0xff]
    %v125 = vld [vmem:[#allocation2 + $0x38] sm:$0xff]
    %v126 = vld [vmem:[#allocation2 + $0x40] sm:$0xff]
    %v127 = vld [vmem:[#allocation2 + $0x48] sm:$0xff]
    %v128 = vld [vmem:[#allocation2 + $0x50] sm:$0xff]
    %v129 = vld [vmem:[#allocation2 + $0x58] sm:$0xff]
    %v130 = vld [vmem:[#allocation2 + $0x60] sm:$0xff]
    %v131 = vld [vmem:[#allocation2 + $0x68] sm:$0xff]
    %v132 = vld [vmem:[#allocation2 + $0x70] sm:$0xff]
    %v133 = vld [vmem:[#allocation2 + $0x78] sm:$0xff]
    %v134 = vld [vmem:[#allocation2 + $0x80] sm:$0xff]
    %v135 = vld [vmem:[#allocation2 + $0x88] sm:$0xff]
    %v136 = vld [vmem:[#allocation2 + $0x90] sm:$0xff]
    %v137 = vld [vmem:[#allocation2 + $0x98] sm:$0xff]
    %v138 = vld [vmem:[#allocation2 + $0xa0] sm:$0xff]
    %v139 = vld [vmem:[#allocation2 + $0xa8] sm:$0xff]
    %v140 = vld [vmem:[#allocation2 + $0xb0] sm:$0xff]
    %v141 = vld [vmem:[#allocation2 + $0xb8] sm:$0xff]
    %v142 = vld [vmem:[#allocation2 + $0xc0] sm:$0xff]
    %v143 = vld [vmem:[#allocation2 + $0xc8] sm:$0xff]
    %v144 = vld [vmem:[#allocation2 + $0xd0] sm:$0xff]
    %v145 = vld [vmem:[#allocation2 + $0xd8] sm:$0xff]
    %v146 = vld [vmem:[#allocation2 + $0xe0] sm:$0xff]
    %v147 = vld [vmem:[#allocation2 + $0xe8] sm:$0xff]
    %v148 = vld [vmem:[#allocation2 + $0xf0] sm:$0xff]
    %v149 = vld [vmem:[#allocation2 + $0xf8] sm:$0xff]
    %v150 = vld [vmem:[#allocation2 + $0x100] sm:$0xff]
    %v151 = vld [vmem:[#allocation2 + $0x108] sm:$0xff]
    %v152 = vld [vmem:[#allocation2 + $0x110] sm:$0xff]
    %v153 = vld [vmem:[#allocation2 + $0x118] sm:$0xff]
    %v154 = vld [vmem:[#allocation2 + $0x120] sm:$0xff]
    %v155 = vld [vmem:[#allocation2 + $0x128] sm:$0xff]
    %v156 = vld [vmem:[#allocation2 + $0x130] sm:$0xff]
    %v157 = vld [vmem:[#allocation2 + $0x138] sm:$0xff]
    %v158 = vld [vmem:[#allocation2 + $0x140] sm:$0xff]
    %v159 = vld [vmem:[#allocation2 + $0x148] sm:$0xff]
    %v160 = vld [vmem:[#allocation2 + $0x150] sm:$0xff]
    %v161 = vld [vmem:[#allocation2 + $0x158] sm:$0xff]
    %v162 = vld [vmem:[#allocation2 + $0x160] sm:$0xff]
    %v163 = vld [vmem:[#allocation2 + $0x168] sm:$0xff]
    %v164 = vld [vmem:[#allocation2 + $0x170] sm:$0xff]
    %v165 = vld [vmem:[#allocation2 + $0x178] sm:$0xff]
    %v166 = vld [vmem:[#allocation2 + $0x180] sm:$0xff]
    %v167 = vld [vmem:[#allocation2 + $0x188] sm:$0xff]
    %v168 = vld [vmem:[#allocation2 + $0x190] sm:$0xff]
    %v169 = vld [vmem:[#allocation2 + $0x198] sm:$0xff]
    %v170 = vld [vmem:[#allocation2 + $0x1a0] sm:$0xff]
    %v171 = vld [vmem:[#allocation2 + $0x1a8] sm:$0xff]
    %v172 = vld [vmem:[#allocation2 + $0x1b0] sm:$0xff]
    %v173 = vld [vmem:[#allocation2 + $0x1b8] sm:$0xff]
    %v174 = vld [vmem:[#allocation2 + $0x1c0] sm:$0xff]
    %v175 = vld [vmem:[#allocation2 + $0x1c8] sm:$0xff]
    %v176 = vld [vmem:[#allocation2 + $0x1d0] sm:$0xff]
    %v177 = vld [vmem:[#allocation2 + $0x1d8] sm:$0xff]
    %v178 = vld [vmem:[#allocation2 + $0x1e0] sm:$0xff]
    %v179 = vld [vmem:[#allocation2 + $0x1e8] sm:$0xff]
    %v180 = vld [vmem:[#allocation2 + $0x1f0] sm:$0xff]
    %v181 = vld [vmem:[#allocation2 + $0x1f8] sm:$0xff]
    %v182 = vld [vmem:[#allocation3] sm:$0xff]
    %v183 = vld [vmem:[#allocation3 + $0x8] sm:$0xff]
    %v184 = vld [vmem:[#allocation3 + $0x10] sm:$0xff]
    %v185 = vld [vmem:[#allocation3 + $0x18] sm:$0xff]
    %v186 = vld [vmem:[#allocation3 + $0x20] sm:$0xff]
    %v187 = vld [vmem:[#allocation3 + $0x28] sm:$0xff]
    %v188 = vld [vmem:[#allocation3 + $0x30] sm:$0xff]
    %v189 = vld [vmem:[#allocation3 + $0x38] sm:$0xff]
    %v190 = vld [vmem:[#allocation3 + $0x40] sm:$0xff]
    %v191 = vld [vmem:[#allocation3 + $0x48] sm:$0xff]
    %v192 = vld [vmem:[#allocation3 + $0x50] sm:$0xff]
    %v193 = vld [vmem:[#allocation3 + $0x58] sm:$0xff]
    %v194 = vld [vmem:[#allocation3 + $0x60] sm:$0xff]
    %v195 = vld [vmem:[#allocation3 + $0x68] sm:$0xff]
    %v196 = vld [vmem:[#allocation3 + $0x70] sm:$0xff]
    %v197 = vld [vmem:[#allocation3 + $0x78] sm:$0xff]
    %v198 = vld [vmem:[#allocation3 + $0x80] sm:$0xff]
    %v199 = vld [vmem:[#allocation3 + $0x88] sm:$0xff]
    %v200 = vld [vmem:[#allocation3 + $0x90] sm:$0xff]
    %v201 = vld [vmem:[#allocation3 + $0x98] sm:$0xff]
    %v202 = vld [vmem:[#allocation3 + $0xa0] sm:$0xff]
    %v203 = vld [vmem:[#allocation3 + $0xa8] sm:$0xff]
    %v204 = vld [vmem:[#allocation3 + $0xb0] sm:$0xff]
    %v205 = vld [vmem:[#allocation3 + $0xb8] sm:$0xff]
    %v206 = vld [vmem:[#allocation3 + $0xc0] sm:$0xff]
    %v207 = vld [vmem:[#allocation3 + $0xc8] sm:$0xff]
    %v208 = vld [vmem:[#allocation3 + $0xd0] sm:$0xff]
    %v209 = vld [vmem:[#allocation3 + $0xd8] sm:$0xff]
    %v210 = vld [vmem:[#allocation3 + $0xe0] sm:$0xff]
    %v211 = vld [vmem:[#allocation3 + $0xe8] sm:$0xff]
    %v212 = vld [vmem:[#allocation3 + $0xf0] sm:$0xff]
    %v213 = vld [vmem:[#allocation3 + $0xf8] sm:$0xff]
    %v214 = vld [vmem:[#allocation3 + $0x100] sm:$0xff]
    %v215 = vld [vmem:[#allocation3 + $0x108] sm:$0xff]
    %v216 = vld [vmem:[#allocation3 + $0x110] sm:$0xff]
    %v217 = vld [vmem:[#allocation3 + $0x118] sm:$0xff]
    %v218 = vld [vmem:[#allocation3 + $0x120] sm:$0xff]
    %v219 = vld [vmem:[#allocation3 + $0x128] sm:$0xff]
    %v220 = vld [vmem:[#allocation3 + $0x130] sm:$0xff]
    %v221 = vld [vmem:[#allocation3 + $0x138] sm:$0xff]
    %v222 = vld [vmem:[#allocation3 + $0x140] sm:$0xff]
    %v223 = vld [vmem:[#allocation3 + $0x148] sm:$0xff]
    %v224 = vld [vmem:[#allocation3 + $0x150] sm:$0xff]
    %v225 = vld [vmem:[#allocation3 + $0x158] sm:$0xff]
    %v226 = vld [vmem:[#allocation3 + $0x160] sm:$0xff]
    %v227 = vld [vmem:[#allocation3 + $0x168] sm:$0xff]
    %v228 = vld [vmem:[#allocation3 + $0x170] sm:$0xff]
    %v229 = vld [vmem:[#allocation3 + $0x178] sm:$0xff]
    %v230 = vld [vmem:[#allocation3 + $0x180] sm:$0xff]
    %v231 = vld [vmem:[#allocation3 + $0x188] sm:$0xff]
    %v232 = vld [vmem:[#allocation3 + $0x190] sm:$0xff]
    %v233 = vld [vmem:[#allocation3 + $0x198] sm:$0xff]
    %v234 = vld [vmem:[#allocation3 + $0x1a0] sm:$0xff]
    %v235 = vld [vmem:[#allocation3 + $0x1a8] sm:$0xff]
    %v236 = vld [vmem:[#allocation3 + $0x1b0] sm:$0xff]
    %v237 = vld [vmem:[#allocation3 + $0x1b8] sm:$0xff]
    %v238 = vld [vmem:[#allocation3 + $0x1c0] sm:$0xff]
    %v239 = vld [vmem:[#allocation3 + $0x1c8] sm:$0xff]
    %v240 = vld [vmem:[#allocation3 + $0x1d0] sm:$0xff]
    %v241 = vld [vmem:[#allocation3 + $0x1d8] sm:$0xff]
    %v242 = vld [vmem:[#allocation3 + $0x1e0] sm:$0xff]
    %v243 = vld [vmem:[#allocation3 + $0x1e8] sm:$0xff]
    %v244 = vld [vmem:[#allocation3 + $0x1f0] sm:$0xff]
    %v245 = vld [vmem:[#allocation3 + $0x1f8] sm:$0xff]
    %v246 = vld [vmem:[#allocation6] sm:$0xff]
    %v247 = vld [vmem:[#allocation6 + $0x8] sm:$0xff]
    %v248 = vld [vmem:[#allocation6 + $0x10] sm:$0xff]
    %v249 = vld [vmem:[#allocation6 + $0x18] sm:$0xff]
    %v250 = vld [vmem:[#allocation6 + $0x20] sm:$0xff]
    %v251 = vld [vmem:[#allocation6 + $0x28] sm:$0xff]
    %v252 = vld [vmem:[#allocation6 + $0x30] sm:$0xff]
    %v253 = vld [vmem:[#allocation6 + $0x38] sm:$0xff]
    %v254 = vld [vmem:[#allocation6 + $0x40] sm:$0xff]
    %v255 = vld [vmem:[#allocation6 + $0x48] sm:$0xff]
    %v256 = vld [vmem:[#allocation6 + $0x50] sm:$0xff]
    %v257 = vld [vmem:[#allocation6 + $0x58] sm:$0xff]
    %v258 = vld [vmem:[#allocation6 + $0x60] sm:$0xff]
    %v259 = vld [vmem:[#allocation6 + $0x68] sm:$0xff]
    %v260 = vld [vmem:[#allocation6 + $0x70] sm:$0xff]
    %v261 = vld [vmem:[#allocation6 + $0x78] sm:$0xff]
    %262 = vmatpush.msra.mxu0 %v261
    %263 = vmatpush.msra.mxu0 %v260
    %264 = vmatpush.msra.mxu0 %v259
    %265 = vmatpush.msra.mxu0 %v258
    %266 = vmatpush.msra.mxu0 %v257
    %267 = vmatpush.msra.mxu0 %v256
    %268 = vmatpush.msra.mxu0 %v255
    %269 = vmatpush.msra.mxu0 %v254
    %270 = vmatpush.msra.mxu0 %v253
    %271 = vmatpush.msra.mxu0 %v252
    %272 = vmatpush.msra.mxu0 %v251
    %273 = vmatpush.msra.mxu0 %v250
    %274 = vmatpush.msra.mxu0 %v249
    %275 = vmatpush.msra.mxu0 %v248
    %276 = vmatpush.msra.mxu0 %v247
    %277 = vmatpush.msra.mxu0 %v246
    %278 = vmatmul.f32.gmra.mxu0 %v182
    %v279 = vpop.f32.mrf.mxu0
    %v280 = vadd.f32 0.0, %v279
    %281 = vmatmul.f32.gmra.mxu0 %v183
    %v282 = vpop.f32.mrf.mxu0
    %v283 = vadd.f32 0.0, %v282
    %284 = vmatmul.f32.gmra.mxu0 %v184
    %v285 = vpop.f32.mrf.mxu0
    %v286 = vadd.f32 0.0, %v285
    %287 = vmatmul.f32.gmra.mxu0 %v185
    %v288 = vpop.f32.mrf.mxu0
    %v289 = vadd.f32 0.0, %v288
    %290 = vmatmul.f32.gmra.mxu0 %v186
    %v291 = vpop.f32.mrf.mxu0
    %v292 = vadd.f32 0.0, %v291
    %293 = vmatmul.f32.gmra.mxu0 %v187
    %v294 = vpop.f32.mrf.mxu0
    %v295 = vadd.f32 0.0, %v294
    %296 = vmatmul.f32.gmra.mxu0 %v188
    %v297 = vpop.f32.mrf.mxu0
    %v298 = vadd.f32 0.0, %v297
    %299 = vmatmul.f32.gmra.mxu0 %v189
    %v300 = vpop.f32.mrf.mxu0
    %v301 = vadd.f32 0.0, %v300
    %302 = vmatmul.f32.gmra.mxu0 %v190
    %v303 = vpop.f32.mrf.mxu0
    %v304 = vadd.f32 0.0, %v303
    %305 = vmatmul.f32.gmra.mxu0 %v191
    %v306 = vpop.f32.mrf.mxu0
    %v307 = vadd.f32 0.0, %v306
    %308 = vmatmul.f32.gmra.mxu0 %v192
    %v309 = vpop.f32.mrf.mxu0
    %v310 = vadd.f32 0.0, %v309
    %311 = vmatmul.f32.gmra.mxu0 %v193
    %v312 = vpop.f32.mrf.mxu0
    %v313 = vadd.f32 0.0, %v312
    %314 = vmatmul.f32.gmra.mxu0 %v194
    %v315 = vpop.f32.mrf.mxu0
    %v316 = vadd.f32 0.0, %v315
    %317 = vmatmul.f32.gmra.mxu0 %v195
    %v318 = vpop.f32.mrf.mxu0
    %v319 = vadd.f32 0.0, %v318
    %320 = vmatmul.f32.gmra.mxu0 %v196
    %v321 = vpop.f32.mrf.mxu0
    %v322 = vadd.f32 0.0, %v321
    %323 = vmatmul.f32.gmra.mxu0 %v197
    %v324 = vpop.f32.mrf.mxu0
    %v325 = vadd.f32 0.0, %v324
    %326 = vmatmul.f32.gmra.mxu0 %v198
    %v327 = vpop.f32.mrf.mxu0
    %v328 = vadd.f32 0.0, %v327
    %329 = vmatmul.f32.gmra.mxu0 %v199
    %v330 = vpop.f32.mrf.mxu0
    %v331 = vadd.f32 0.0, %v330
    %332 = vmatmul.f32.gmra.mxu0 %v200
    %v333 = vpop.f32.mrf.mxu0
    %v334 = vadd.f32 0.0, %v333
    %335 = vmatmul.f32.gmra.mxu0 %v201
    %v336 = vpop.f32.mrf.mxu0
    %v337 = vadd.f32 0.0, %v336
    %338 = vmatmul.f32.gmra.mxu0 %v202
    %v339 = vpop.f32.mrf.mxu0
    %v340 = vadd.f32 0.0, %v339
    %341 = vmatmul.f32.gmra.mxu0 %v203
    %v342 = vpop.f32.mrf.mxu0
    %v343 = vadd.f32 0.0, %v342
    %344 = vmatmul.f32.gmra.mxu0 %v204
    %v345 = vpop.f32.mrf.mxu0
    %v346 = vadd.f32 0.0, %v345
    %347 = vmatmul.f32.gmra.mxu0 %v205
    %v348 = vpop.f32.mrf.mxu0
    %v349 = vadd.f32 0.0, %v348
    %350 = vmatmul.f32.gmra.mxu0 %v206
    %v351 = vpop.f32.mrf.mxu0
    %v352 = vadd.f32 0.0, %v351
    %353 = vmatmul.f32.gmra.mxu0 %v207
    %v354 = vpop.f32.mrf.mxu0
    %v355 = vadd.f32 0.0, %v354
    %356 = vmatmul.f32.gmra.mxu0 %v208
    %v357 = vpop.f32.mrf.mxu0
    %v358 = vadd.f32 0.0, %v357
    %359 = vmatmul.f32.gmra.mxu0 %v209
    %v360 = vpop.f32.mrf.mxu0
    %v361 = vadd.f32 0.0, %v360
    %362 = vmatmul.f32.gmra.mxu0 %v210
    %v363 = vpop.f32.mrf.mxu0
    %v364 = vadd.f32 0.0, %v363
    %365 = vmatmul.f32.gmra.mxu0 %v211
    %v366 = vpop.f32.mrf.mxu0
    %v367 = vadd.f32 0.0, %v366
    %368 = vmatmul.f32.gmra.mxu0 %v212
    %v369 = vpop.f32.mrf.mxu0
    %v370 = vadd.f32 0.0, %v369
    %371 = vmatmul.f32.gmra.mxu0 %v213
    %v372 = vpop.f32.mrf.mxu0
    %v373 = vadd.f32 0.0, %v372
    %374 = vmatmul.f32.gmra.mxu0 %v214
    %v375 = vpop.f32.mrf.mxu0
    %v376 = vadd.f32 0.0, %v375
    %377 = vmatmul.f32.gmra.mxu0 %v215
    %v378 = vpop.f32.mrf.mxu0
    %v379 = vadd.f32 0.0, %v378
    %380 = vmatmul.f32.gmra.mxu0 %v216
    %v381 = vpop.f32.mrf.mxu0
    %v382 = vadd.f32 0.0, %v381
    %383 = vmatmul.f32.gmra.mxu0 %v217
    %v384 = vpop.f32.mrf.mxu0
    %v385 = vadd.f32 0.0, %v384
    %386 = vmatmul.f32.gmra.mxu0 %v218
    %v387 = vpop.f32.mrf.mxu0
    %v388 = vadd.f32 0.0, %v387
    %389 = vmatmul.f32.gmra.mxu0 %v219
    %v390 = vpop.f32.mrf.mxu0
    %v391 = vadd.f32 0.0, %v390
    %392 = vmatmul.f32.gmra.mxu0 %v220
    %v393 = vpop.f32.mrf.mxu0
    %v394 = vadd.f32 0.0, %v393
    %395 = vmatmul.f32.gmra.mxu0 %v221
    %v396 = vpop.f32.mrf.mxu0
    %v397 = vadd.f32 0.0, %v396
    %398 = vmatmul.f32.gmra.mxu0 %v222
    %v399 = vpop.f32.mrf.mxu0
    %v400 = vadd.f32 0.0, %v399
    %401 = vmatmul.f32.gmra.mxu0 %v223
    %v402 = vpop.f32.mrf.mxu0
    %v403 = vadd.f32 0.0, %v402
    %404 = vmatmul.f32.gmra.mxu0 %v224
    %v405 = vpop.f32.mrf.mxu0
    %v406 = vadd.f32 0.0, %v405
    %407 = vmatmul.f32.gmra.mxu0 %v225
    %v408 = vpop.f32.mrf.mxu0
    %v409 = vadd.f32 0.0, %v408
    %410 = vmatmul.f32.gmra.mxu0 %v226
    %v411 = vpop.f32.mrf.mxu0
    %v412 = vadd.f32 0.0, %v411
    %413 = vmatmul.f32.gmra.mxu0 %v227
    %v414 = vpop.f32.mrf.mxu0
    %v415 = vadd.f32 0.0, %v414
    %416 = vmatmul.f32.gmra.mxu0 %v228
    %v417 = vpop.f32.mrf.mxu0
    %v418 = vadd.f32 0.0, %v417
    %419 = vmatmul.f32.gmra.mxu0 %v229
    %v420 = vpop.f32.mrf.mxu0
    %v421 = vadd.f32 0.0, %v420
    %422 = vmatmul.f32.gmra.mxu0 %v230
    %v423 = vpop.f32.mrf.mxu0
    %v424 = vadd.f32 0.0, %v423
    %425 = vmatmul.f32.gmra.mxu0 %v231
    %v426 = vpop.f32.mrf.mxu0
    %v427 = vadd.f32 0.0, %v426
    %428 = vmatmul.f32.gmra.mxu0 %v232
    %v429 = vpop.f32.mrf.mxu0
    %v430 = vadd.f32 0.0, %v429
    %431 = vmatmul.f32.gmra.mxu0 %v233
    %v432 = vpop.f32.mrf.mxu0
    %v433 = vadd.f32 0.0, %v432
    %434 = vmatmul.f32.gmra.mxu0 %v234
    %v435 = vpop.f32.mrf.mxu0
    %v436 = vadd.f32 0.0, %v435
    %437 = vmatmul.f32.gmra.mxu0 %v235
    %v438 = vpop.f32.mrf.mxu0
    %v439 = vadd.f32 0.0, %v438
    %440 = vmatmul.f32.gmra.mxu0 %v236
    %v441 = vpop.f32.mrf.mxu0
    %v442 = vadd.f32 0.0, %v441
    %443 = vmatmul.f32.gmra.mxu0 %v237
    %v444 = vpop.f32.mrf.mxu0
    %v445 = vadd.f32 0.0, %v444
    %446 = vmatmul.f32.gmra.mxu0 %v238
    %v447 = vpop.f32.mrf.mxu0
    %v448 = vadd.f32 0.0, %v447
    %449 = vmatmul.f32.gmra.mxu0 %v239
    %v450 = vpop.f32.mrf.mxu0
    %v451 = vadd.f32 0.0, %v450
    %452 = vmatmul.f32.gmra.mxu0 %v240
    %v453 = vpop.f32.mrf.mxu0
    %v454 = vadd.f32 0.0, %v453
    %455 = vmatmul.f32.gmra.mxu0 %v241
    %v456 = vpop.f32.mrf.mxu0
    %v457 = vadd.f32 0.0, %v456
    %458 = vmatmul.f32.gmra.mxu0 %v242
    %v459 = vpop.f32.mrf.mxu0
    %v460 = vadd.f32 0.0, %v459
    %461 = vmatmul.f32.gmra.mxu0 %v243
    %v462 = vpop.f32.mrf.mxu0
    %v463 = vadd.f32 0.0, %v462
    %464 = vmatmul.f32.gmra.mxu0 %v244
    %v465 = vpop.f32.mrf.mxu0
    %v466 = vadd.f32 0.0, %v465
    %467 = vmatmul.f32.gmra.mxu0 %v245
    %v468 = vpop.f32.mrf.mxu0
    %v469 = vadd.f32 0.0, %v468
    %470 = vdwg.mxu0
    %v471 = vadd.f32 %v118, %v280
    %v472 = vadd.f32 %v119, %v283
    %v473 = vadd.f32 %v120, %v286
    %v474 = vadd.f32 %v121, %v289
    %v475 = vadd.f32 %v122, %v292
    %v476 = vadd.f32 %v123, %v295
    %v477 = vadd.f32 %v124, %v298
    %v478 = vadd.f32 %v125, %v301
    %v479 = vadd.f32 %v126, %v304
    %v480 = vadd.f32 %v127, %v307
    %v481 = vadd.f32 %v128, %v310
    %v482 = vadd.f32 %v129, %v313
    %v483 = vadd.f32 %v130, %v316
    %v484 = vadd.f32 %v131, %v319
    %v485 = vadd.f32 %v132, %v322
    %v486 = vadd.f32 %v133, %v325
    %v487 = vadd.f32 %v134, %v328
    %v488 = vadd.f32 %v135, %v331
    %v489 = vadd.f32 %v136, %v334
    %v490 = vadd.f32 %v137, %v337
    %v491 = vadd.f32 %v138, %v340
    %v492 = vadd.f32 %v139, %v343
    %v493 = vadd.f32 %v140, %v346
    %v494 = vadd.f32 %v141, %v349
    %v495 = vadd.f32 %v142, %v352
    %v496 = vadd.f32 %v143, %v355
    %v497 = vadd.f32 %v144, %v358
    %v498 = vadd.f32 %v145, %v361
    %v499 = vadd.f32 %v146, %v364
    %v500 = vadd.f32 %v147, %v367
    %v501 = vadd.f32 %v148, %v370
    %v502 = vadd.f32 %v149, %v373
    %v503 = vadd.f32 %v150, %v376
    %v504 = vadd.f32 %v151, %v379
    %v505 = vadd.f32 %v152, %v382
    %v506 = vadd.f32 %v153, %v385
    %v507 = vadd.f32 %v154, %v388
    %v508 = vadd.f32 %v155, %v391
    %v509 = vadd.f32 %v156, %v394
    %v510 = vadd.f32 %v157, %v397
    %v511 = vadd.f32 %v158, %v400
    %v512 = vadd.f32 %v159, %v403
    %v513 = vadd.f32 %v160, %v406
    %v514 = vadd.f32 %v161, %v409
    %v515 = vadd.f32 %v162, %v412
    %v516 = vadd.f32 %v163, %v415
    %v517 = vadd.f32 %v164, %v418
    %v518 = vadd.f32 %v165, %v421
    %v519 = vadd.f32 %v166, %v424
    %v520 = vadd.f32 %v167, %v427
    %v521 = vadd.f32 %v168, %v430
    %v522 = vadd.f32 %v169, %v433
    %v523 = vadd.f32 %v170, %v436
    %v524 = vadd.f32 %v171, %v439
    %v525 = vadd.f32 %v172, %v442
    %v526 = vadd.f32 %v173, %v445
    %v527 = vadd.f32 %v174, %v448
    %v528 = vadd.f32 %v175, %v451
    %v529 = vadd.f32 %v176, %v454
    %v530 = vadd.f32 %v177, %v457
    %v531 = vadd.f32 %v178, %v460
    %v532 = vadd.f32 %v179, %v463
    %v533 = vadd.f32 %v180, %v466
    %v534 = vadd.f32 %v181, %v469
    %535 = vst [vmem:[#allocation2] sm:$0xff] %v471
    %536 = vst [vmem:[#allocation2 + $0x8] sm:$0xff] %v472
    %537 = vst [vmem:[#allocation2 + $0x10] sm:$0xff] %v473
    %538 = vst [vmem:[#allocation2 + $0x18] sm:$0xff] %v474
    %539 = vst [vmem:[#allocation2 + $0x20] sm:$0xff] %v475
    %540 = vst [vmem:[#allocation2 + $0x28] sm:$0xff] %v476
    %541 = vst [vmem:[#allocation2 + $0x30] sm:$0xff] %v477
    %542 = vst [vmem:[#allocation2 + $0x38] sm:$0xff] %v478
    %543 = vst [vmem:[#allocation2 + $0x40] sm:$0xff] %v479
    %544 = vst [vmem:[#allocation2 + $0x48] sm:$0xff] %v480
    %545 = vst [vmem:[#allocation2 + $0x50] sm:$0xff] %v481
    %546 = vst [vmem:[#allocation2 + $0x58] sm:$0xff] %v482
    %547 = vst [vmem:[#allocation2 + $0x60] sm:$0xff] %v483
    %548 = vst [vmem:[#allocation2 + $0x68] sm:$0xff] %v484
    %549 = vst [vmem:[#allocation2 + $0x70] sm:$0xff] %v485
    %550 = vst [vmem:[#allocation2 + $0x78] sm:$0xff] %v486
    %551 = vst [vmem:[#allocation2 + $0x80] sm:$0xff] %v487
    %552 = vst [vmem:[#allocation2 + $0x88] sm:$0xff] %v488
    %553 = vst [vmem:[#allocation2 + $0x90] sm:$0xff] %v489
    %554 = vst [vmem:[#allocation2 + $0x98] sm:$0xff] %v490
    %555 = vst [vmem:[#allocation2 + $0xa0] sm:$0xff] %v491
    %556 = vst [vmem:[#allocation2 + $0xa8] sm:$0xff] %v492
    %557 = vst [vmem:[#allocation2 + $0xb0] sm:$0xff] %v493
    %558 = vst [vmem:[#allocation2 + $0xb8] sm:$0xff] %v494
    %559 = vst [vmem:[#allocation2 + $0xc0] sm:$0xff] %v495
    %560 = vst [vmem:[#allocation2 + $0xc8] sm:$0xff] %v496
    %561 = vst [vmem:[#allocation2 + $0xd0] sm:$0xff] %v497
    %562 = vst [vmem:[#allocation2 + $0xd8] sm:$0xff] %v498
    %563 = vst [vmem:[#allocation2 + $0xe0] sm:$0xff] %v499
    %564 = vst [vmem:[#allocation2 + $0xe8] sm:$0xff] %v500
    %565 = vst [vmem:[#allocation2 + $0xf0] sm:$0xff] %v501
    %566 = vst [vmem:[#allocation2 + $0xf8] sm:$0xff] %v502
    %567 = vst [vmem:[#allocation2 + $0x100] sm:$0xff] %v503
    %568 = vst [vmem:[#allocation2 + $0x108] sm:$0xff] %v504
    %569 = vst [vmem:[#allocation2 + $0x110] sm:$0xff] %v505
    %570 = vst [vmem:[#allocation2 + $0x118] sm:$0xff] %v506
    %571 = vst [vmem:[#allocation2 + $0x120] sm:$0xff] %v507
    %572 = vst [vmem:[#allocation2 + $0x128] sm:$0xff] %v508
    %573 = vst [vmem:[#allocation2 + $0x130] sm:$0xff] %v509
    %574 = vst [vmem:[#allocation2 + $0x138] sm:$0xff] %v510
    %575 = vst [vmem:[#allocation2 + $0x140] sm:$0xff] %v511
    %576 = vst [vmem:[#allocation2 + $0x148] sm:$0xff] %v512
    %577 = vst [vmem:[#allocation2 + $0x150] sm:$0xff] %v513
    %578 = vst [vmem:[#allocation2 + $0x158] sm:$0xff] %v514
    %579 = vst [vmem:[#allocation2 + $0x160] sm:$0xff] %v515
    %580 = vst [vmem:[#allocation2 + $0x168] sm:$0xff] %v516
    %581 = vst [vmem:[#allocation2 + $0x170] sm:$0xff] %v517
    %582 = vst [vmem:[#allocation2 + $0x178] sm:$0xff] %v518
    %583 = vst [vmem:[#allocation2 + $0x180] sm:$0xff] %v519
    %584 = vst [vmem:[#allocation2 + $0x188] sm:$0xff] %v520
    %585 = vst [vmem:[#allocation2 + $0x190] sm:$0xff] %v521
    %586 = vst [vmem:[#allocation2 + $0x198] sm:$0xff] %v522
    %587 = vst [vmem:[#allocation2 + $0x1a0] sm:$0xff] %v523
    %588 = vst [vmem:[#allocation2 + $0x1a8] sm:$0xff] %v524
    %589 = vst [vmem:[#allocation2 + $0x1b0] sm:$0xff] %v525
    %590 = vst [vmem:[#allocation2 + $0x1b8] sm:$0xff] %v526
    %591 = vst [vmem:[#allocation2 + $0x1c0] sm:$0xff] %v527
    %592 = vst [vmem:[#allocation2 + $0x1c8] sm:$0xff] %v528
    %593 = vst [vmem:[#allocation2 + $0x1d0] sm:$0xff] %v529
    %594 = vst [vmem:[#allocation2 + $0x1d8] sm:$0xff] %v530
    %595 = vst [vmem:[#allocation2 + $0x1e0] sm:$0xff] %v531
    %596 = vst [vmem:[#allocation2 + $0x1e8] sm:$0xff] %v532
    %597 = vst [vmem:[#allocation2 + $0x1f0] sm:$0xff] %v533
    %598 = vst [vmem:[#allocation2 + $0x1f8] sm:$0xff] %v534
    // Predicated region
    $region30: #{tpu_custom_call.1} parent=1 // pred_check
      %p599 = pneg %p50
    $region31: #{tpu_custom_call.1} parent=1 // pred_check_branch
      %601 = sbr.rel (%p599) target = $region33
    $region32: #{tpu_custom_call.1} parent=1 // pred_region
      %v602 = vld [vmem:[#allocation2] sm:$0xff]
      %v603 = vld [vmem:[#allocation2 + $0x8] sm:$0xff]
      %v604 = vld [vmem:[#allocation2 + $0x10] sm:$0xff]
      %v605 = vld [vmem:[#allocation2 + $0x18] sm:$0xff]
      %v606 = vld [vmem:[#allocation2 + $0x20] sm:$0xff]
      %v607 = vld [vmem:[#allocation2 + $0x28] sm:$0xff]
      %v608 = vld [vmem:[#allocation2 + $0x30] sm:$0xff]
      %v609 = vld [vmem:[#allocation2 + $0x38] sm:$0xff]
      %v610 = vld [vmem:[#allocation2 + $0x40] sm:$0xff]
      %v611 = vld [vmem:[#allocation2 + $0x48] sm:$0xff]
      %v612 = vld [vmem:[#allocation2 + $0x50] sm:$0xff]
      %v613 = vld [vmem:[#allocation2 + $0x58] sm:$0xff]
      %v614 = vld [vmem:[#allocation2 + $0x60] sm:$0xff]
      %v615 = vld [vmem:[#allocation2 + $0x68] sm:$0xff]
      %v616 = vld [vmem:[#allocation2 + $0x70] sm:$0xff]
      %v617 = vld [vmem:[#allocation2 + $0x78] sm:$0xff]
      %v618 = vld [vmem:[#allocation2 + $0x80] sm:$0xff]
      %v619 = vld [vmem:[#allocation2 + $0x88] sm:$0xff]
      %v620 = vld [vmem:[#allocation2 + $0x90] sm:$0xff]
      %v621 = vld [vmem:[#allocation2 + $0x98] sm:$0xff]
      %v622 = vld [vmem:[#allocation2 + $0xa0] sm:$0xff]
      %v623 = vld [vmem:[#allocation2 + $0xa8] sm:$0xff]
      %v624 = vld [vmem:[#allocation2 + $0xb0] sm:$0xff]
      %v625 = vld [vmem:[#allocation2 + $0xb8] sm:$0xff]
      %v626 = vld [vmem:[#allocation2 + $0xc0] sm:$0xff]
      %v627 = vld [vmem:[#allocation2 + $0xc8] sm:$0xff]
      %v628 = vld [vmem:[#allocation2 + $0xd0] sm:$0xff]
      %v629 = vld [vmem:[#allocation2 + $0xd8] sm:$0xff]
      %v630 = vld [vmem:[#allocation2 + $0xe0] sm:$0xff]
      %v631 = vld [vmem:[#allocation2 + $0xe8] sm:$0xff]
      %v632 = vld [vmem:[#allocation2 + $0xf0] sm:$0xff]
      %v633 = vld [vmem:[#allocation2 + $0xf8] sm:$0xff]
      %v634 = vld [vmem:[#allocation2 + $0x100] sm:$0xff]
      %v635 = vld [vmem:[#allocation2 + $0x108] sm:$0xff]
      %v636 = vld [vmem:[#allocation2 + $0x110] sm:$0xff]
      %v637 = vld [vmem:[#allocation2 + $0x118] sm:$0xff]
      %v638 = vld [vmem:[#allocation2 + $0x120] sm:$0xff]
      %v639 = vld [vmem:[#allocation2 + $0x128] sm:$0xff]
      %v640 = vld [vmem:[#allocation2 + $0x130] sm:$0xff]
      %v641 = vld [vmem:[#allocation2 + $0x138] sm:$0xff]
      %v642 = vld [vmem:[#allocation2 + $0x140] sm:$0xff]
      %v643 = vld [vmem:[#allocation2 + $0x148] sm:$0xff]
      %v644 = vld [vmem:[#allocation2 + $0x150] sm:$0xff]
      %v645 = vld [vmem:[#allocation2 + $0x158] sm:$0xff]
      %v646 = vld [vmem:[#allocation2 + $0x160] sm:$0xff]
      %v647 = vld [vmem:[#allocation2 + $0x168] sm:$0xff]
      %v648 = vld [vmem:[#allocation2 + $0x170] sm:$0xff]
      %v649 = vld [vmem:[#allocation2 + $0x178] sm:$0xff]
      %v650 = vld [vmem:[#allocation2 + $0x180] sm:$0xff]
      %v651 = vld [vmem:[#allocation2 + $0x188] sm:$0xff]
      %v652 = vld [vmem:[#allocation2 + $0x190] sm:$0xff]
      %v653 = vld [vmem:[#allocation2 + $0x198] sm:$0xff]
      %v654 = vld [vmem:[#allocation2 + $0x1a0] sm:$0xff]
      %v655 = vld [vmem:[#allocation2 + $0x1a8] sm:$0xff]
      %v656 = vld [vmem:[#allocation2 + $0x1b0] sm:$0xff]
      %v657 = vld [vmem:[#allocation2 + $0x1b8] sm:$0xff]
      %v658 = vld [vmem:[#allocation2 + $0x1c0] sm:$0xff]
      %v659 = vld [vmem:[#allocation2 + $0x1c8] sm:$0xff]
      %v660 = vld [vmem:[#allocation2 + $0x1d0] sm:$0xff]
      %v661 = vld [vmem:[#allocation2 + $0x1d8] sm:$0xff]
      %v662 = vld [vmem:[#allocation2 + $0x1e0] sm:$0xff]
      %v663 = vld [vmem:[#allocation2 + $0x1e8] sm:$0xff]
      %v664 = vld [vmem:[#allocation2 + $0x1f0] sm:$0xff]
      %v665 = vld [vmem:[#allocation2 + $0x1f8] sm:$0xff]
      %v666 = vld [vmem:[%s2] sm:$0x1]
      %v668 = vperm.slane %v666, 0
      %v670 = vmul.f32 %v602, %v668
      %v671 = vmul.f32 %v603, %v668
      %v672 = vmul.f32 %v604, %v668
      %v673 = vmul.f32 %v605, %v668
      %v674 = vmul.f32 %v606, %v668
      %v675 = vmul.f32 %v607, %v668
      %v676 = vmul.f32 %v608, %v668
      %v677 = vmul.f32 %v609, %v668
      %v678 = vmul.f32 %v610, %v668
      %v679 = vmul.f32 %v611, %v668
      %v680 = vmul.f32 %v612, %v668
      %v681 = vmul.f32 %v613, %v668
      %v682 = vmul.f32 %v614, %v668
      %v683 = vmul.f32 %v615, %v668
      %v684 = vmul.f32 %v616, %v668
      %v685 = vmul.f32 %v617, %v668
      %v686 = vmul.f32 %v618, %v668
      %v687 = vmul.f32 %v619, %v668
      %v688 = vmul.f32 %v620, %v668
      %v689 = vmul.f32 %v621, %v668
      %v690 = vmul.f32 %v622, %v668
      %v691 = vmul.f32 %v623, %v668
      %v692 = vmul.f32 %v624, %v668
      %v693 = vmul.f32 %v625, %v668
      %v694 = vmul.f32 %v626, %v668
      %v695 = vmul.f32 %v627, %v668
      %v696 = vmul.f32 %v628, %v668
      %v697 = vmul.f32 %v629, %v668
      %v698 = vmul.f32 %v630, %v668
      %v699 = vmul.f32 %v631, %v668
      %v700 = vmul.f32 %v632, %v668
      %v701 = vmul.f32 %v633, %v668
      %v702 = vmul.f32 %v634, %v668
      %v703 = vmul.f32 %v635, %v668
      %v704 = vmul.f32 %v636, %v668
      %v705 = vmul.f32 %v637, %v668
      %v706 = vmul.f32 %v638, %v668
      %v707 = vmul.f32 %v639, %v668
      %v708 = vmul.f32 %v640, %v668
      %v709 = vmul.f32 %v641, %v668
      %v710 = vmul.f32 %v642, %v668
      %v711 = vmul.f32 %v643, %v668
      %v712 = vmul.f32 %v644, %v668
      %v713 = vmul.f32 %v645, %v668
      %v714 = vmul.f32 %v646, %v668
      %v715 = vmul.f32 %v647, %v668
      %v716 = vmul.f32 %v648, %v668
      %v717 = vmul.f32 %v649, %v668
      %v718 = vmul.f32 %v650, %v668
      %v719 = vmul.f32 %v651, %v668
      %v720 = vmul.f32 %v652, %v668
      %v721 = vmul.f32 %v653, %v668
      %v722 = vmul.f32 %v654, %v668
      %v723 = vmul.f32 %v655, %v668
      %v724 = vmul.f32 %v656, %v668
      %v725 = vmul.f32 %v657, %v668
      %v726 = vmul.f32 %v658, %v668
      %v727 = vmul.f32 %v659, %v668
      %v728 = vmul.f32 %v660, %v668
      %v729 = vmul.f32 %v661, %v668
      %v730 = vmul.f32 %v662, %v668
      %v731 = vmul.f32 %v663, %v668
      %v732 = vmul.f32 %v664, %v668
      %v733 = vmul.f32 %v665, %v668
      %v734 = vld [vmem:[%s3] sm:$0x1]
      %v736 = vperm.slane %v734, 0
      %v738 = vadd.f32 %v670, %v736
      %v739 = vadd.f32 %v671, %v736
      %v740 = vadd.f32 %v672, %v736
      %v741 = vadd.f32 %v673, %v736
      %v742 = vadd.f32 %v674, %v736
      %v743 = vadd.f32 %v675, %v736
      %v744 = vadd.f32 %v676, %v736
      %v745 = vadd.f32 %v677, %v736
      %v746 = vadd.f32 %v678, %v736
      %v747 = vadd.f32 %v679, %v736
      %v748 = vadd.f32 %v680, %v736
      %v749 = vadd.f32 %v681, %v736
      %v750 = vadd.f32 %v682, %v736
      %v751 = vadd.f32 %v683, %v736
      %v752 = vadd.f32 %v684, %v736
      %v753 = vadd.f32 %v685, %v736
      %v754 = vadd.f32 %v686, %v736
      %v755 = vadd.f32 %v687, %v736
      %v756 = vadd.f32 %v688, %v736
      %v757 = vadd.f32 %v689, %v736
      %v758 = vadd.f32 %v690, %v736
      %v759 = vadd.f32 %v691, %v736
      %v760 = vadd.f32 %v692, %v736
      %v761 = vadd.f32 %v693, %v736
      %v762 = vadd.f32 %v694, %v736
      %v763 = vadd.f32 %v695, %v736
      %v764 = vadd.f32 %v696, %v736
      %v765 = vadd.f32 %v697, %v736
      %v766 = vadd.f32 %v698, %v736
      %v767 = vadd.f32 %v699, %v736
      %v768 = vadd.f32 %v700, %v736
      %v769 = vadd.f32 %v701, %v736
      %v770 = vadd.f32 %v702, %v736
      %v771 = vadd.f32 %v703, %v736
      %v772 = vadd.f32 %v704, %v736
      %v773 = vadd.f32 %v705, %v736
      %v774 = vadd.f32 %v706, %v736
      %v775 = vadd.f32 %v707, %v736
      %v776 = vadd.f32 %v708, %v736
      %v777 = vadd.f32 %v709, %v736
      %v778 = vadd.f32 %v710, %v736
      %v779 = vadd.f32 %v711, %v736
      %v780 = vadd.f32 %v712, %v736
      %v781 = vadd.f32 %v713, %v736
      %v782 = vadd.f32 %v714, %v736
      %v783 = vadd.f32 %v715, %v736
      %v784 = vadd.f32 %v716, %v736
      %v785 = vadd.f32 %v717, %v736
      %v786 = vadd.f32 %v718, %v736
      %v787 = vadd.f32 %v719, %v736
      %v788 = vadd.f32 %v720, %v736
      %v789 = vadd.f32 %v721, %v736
      %v790 = vadd.f32 %v722, %v736
      %v791 = vadd.f32 %v723, %v736
      %v792 = vadd.f32 %v724, %v736
      %v793 = vadd.f32 %v725, %v736
      %v794 = vadd.f32 %v726, %v736
      %v795 = vadd.f32 %v727, %v736
      %v796 = vadd.f32 %v728, %v736
      %v797 = vadd.f32 %v729, %v736
      %v798 = vadd.f32 %v730, %v736
      %v799 = vadd.f32 %v731, %v736
      %v800 = vadd.f32 %v732, %v736
      %v801 = vadd.f32 %v733, %v736
      %v802 = vxor.u32 %v738, 2147483648
      %v803 = vxor.u32 %v739, 2147483648
      %v804 = vxor.u32 %v740, 2147483648
      %v805 = vxor.u32 %v741, 2147483648
      %v806 = vxor.u32 %v742, 2147483648
      %v807 = vxor.u32 %v743, 2147483648
      %v808 = vxor.u32 %v744, 2147483648
      %v809 = vxor.u32 %v745, 2147483648
      %v810 = vxor.u32 %v746, 2147483648
      %v811 = vxor.u32 %v747, 2147483648
      %v812 = vxor.u32 %v748, 2147483648
      %v813 = vxor.u32 %v749, 2147483648
      %v814 = vxor.u32 %v750, 2147483648
      %v815 = vxor.u32 %v751, 2147483648
      %v816 = vxor.u32 %v752, 2147483648
      %v817 = vxor.u32 %v753, 2147483648
      %v818 = vxor.u32 %v754, 2147483648
      %v819 = vxor.u32 %v755, 2147483648
      %v820 = vxor.u32 %v756, 2147483648
      %v821 = vxor.u32 %v757, 2147483648
      %v822 = vxor.u32 %v758, 2147483648
      %v823 = vxor.u32 %v759, 2147483648
      %v824 = vxor.u32 %v760, 2147483648
      %v825 = vxor.u32 %v761, 2147483648
      %v826 = vxor.u32 %v762, 2147483648
      %v827 = vxor.u32 %v763, 2147483648
      %v828 = vxor.u32 %v764, 2147483648
      %v829 = vxor.u32 %v765, 2147483648
      %v830 = vxor.u32 %v766, 2147483648
      %v831 = vxor.u32 %v767, 2147483648
      %v832 = vxor.u32 %v768, 2147483648
      %v833 = vxor.u32 %v769, 2147483648
      %v834 = vxor.u32 %v770, 2147483648
      %v835 = vxor.u32 %v771, 2147483648
      %v836 = vxor.u32 %v772, 2147483648
      %v837 = vxor.u32 %v773, 2147483648
      %v838 = vxor.u32 %v774, 2147483648
      %v839 = vxor.u32 %v775, 2147483648
      %v840 = vxor.u32 %v776, 2147483648
      %v841 = vxor.u32 %v777, 2147483648
      %v842 = vxor.u32 %v778, 2147483648
      %v843 = vxor.u32 %v779, 2147483648
      %v844 = vxor.u32 %v780, 2147483648
      %v845 = vxor.u32 %v781, 2147483648
      %v846 = vxor.u32 %v782, 2147483648
      %v847 = vxor.u32 %v783, 2147483648
      %v848 = vxor.u32 %v784, 2147483648
      %v849 = vxor.u32 %v785, 2147483648
      %v850 = vxor.u32 %v786, 2147483648
      %v851 = vxor.u32 %v787, 2147483648
      %v852 = vxor.u32 %v788, 2147483648
      %v853 = vxor.u32 %v789, 2147483648
      %v854 = vxor.u32 %v790, 2147483648
      %v855 = vxor.u32 %v791, 2147483648
      %v856 = vxor.u32 %v792, 2147483648
      %v857 = vxor.u32 %v793, 2147483648
      %v858 = vxor.u32 %v794, 2147483648
      %v859 = vxor.u32 %v795, 2147483648
      %v860 = vxor.u32 %v796, 2147483648
      %v861 = vxor.u32 %v797, 2147483648
      %v862 = vxor.u32 %v798, 2147483648
      %v863 = vxor.u32 %v799, 2147483648
      %v864 = vxor.u32 %v800, 2147483648
      %v865 = vxor.u32 %v801, 2147483648
      %v866 = vmul.f32 %v802, 1.442695
      %v867 = vpow.pop %v866
      %v868 = vmul.f32 %v803, 1.442695
      %v869 = vpow.pop %v868
      %v870 = vmul.f32 %v804, 1.442695
      %v871 = vpow.pop %v870
      %v872 = vmul.f32 %v805, 1.442695
      %v873 = vpow.pop %v872
      %v874 = vmul.f32 %v806, 1.442695
      %v875 = vpow.pop %v874
      %v876 = vmul.f32 %v807, 1.442695
      %v877 = vpow.pop %v876
      %v878 = vmul.f32 %v808, 1.442695
      %v879 = vpow.pop %v878
      %v880 = vmul.f32 %v809, 1.442695
      %v881 = vpow.pop %v880
      %v882 = vmul.f32 %v810, 1.442695
      %v883 = vpow.pop %v882
      %v884 = vmul.f32 %v811, 1.442695
      %v885 = vpow.pop %v884
      %v886 = vmul.f32 %v812, 1.442695
      %v887 = vpow.pop %v886
      %v888 = vmul.f32 %v813, 1.442695
      %v889 = vpow.pop %v888
      %v890 = vmul.f32 %v814, 1.442695
      %v891 = vpow.pop %v890
      %v892 = vmul.f32 %v815, 1.442695
      %v893 = vpow.pop %v892
      %v894 = vmul.f32 %v816, 1.442695
      %v895 = vpow.pop %v894
      %v896 = vmul.f32 %v817, 1.442695
      %v897 = vpow.pop %v896
      %v898 = vmul.f32 %v818, 1.442695
      %v899 = vpow.pop %v898
      %v900 = vmul.f32 %v819, 1.442695
      %v901 = vpow.pop %v900
      %v902 = vmul.f32 %v820, 1.442695
      %v903 = vpow.pop %v902
      %v904 = vmul.f32 %v821, 1.442695
      %v905 = vpow.pop %v904
      %v906 = vmul.f32 %v822, 1.442695
      %v907 = vpow.pop %v906
      %v908 = vmul.f32 %v823, 1.442695
      %v909 = vpow.pop %v908
      %v910 = vmul.f32 %v824, 1.442695
      %v911 = vpow.pop %v910
      %v912 = vmul.f32 %v825, 1.442695
      %v913 = vpow.pop %v912
      %v914 = vmul.f32 %v826, 1.442695
      %v915 = vpow.pop %v914
      %v916 = vmul.f32 %v827, 1.442695
      %v917 = vpow.pop %v916
      %v918 = vmul.f32 %v828, 1.442695
      %v919 = vpow.pop %v918
      %v920 = vmul.f32 %v829, 1.442695
      %v921 = vpow.pop %v920
      %v922 = vmul.f32 %v830, 1.442695
      %v923 = vpow.pop %v922
      %v924 = vmul.f32 %v831, 1.442695
      %v925 = vpow.pop %v924
      %v926 = vmul.f32 %v832, 1.442695
      %v927 = vpow.pop %v926
      %v928 = vmul.f32 %v833, 1.442695
      %v929 = vpow.pop %v928
      %v930 = vmul.f32 %v834, 1.442695
      %v931 = vpow.pop %v930
      %v932 = vmul.f32 %v835, 1.442695
      %v933 = vpow.pop %v932
      %v934 = vmul.f32 %v836, 1.442695
      %v935 = vpow.pop %v934
      %v936 = vmul.f32 %v837, 1.442695
      %v937 = vpow.pop %v936
      %v938 = vmul.f32 %v838, 1.442695
      %v939 = vpow.pop %v938
      %v940 = vmul.f32 %v839, 1.442695
      %v941 = vpow.pop %v940
      %v942 = vmul.f32 %v840, 1.442695
      %v943 = vpow.pop %v942
      %v944 = vmul.f32 %v841, 1.442695
      %v945 = vpow.pop %v944
      %v946 = vmul.f32 %v842, 1.442695
      %v947 = vpow.pop %v946
      %v948 = vmul.f32 %v843, 1.442695
      %v949 = vpow.pop %v948
      %v950 = vmul.f32 %v844, 1.442695
      %v951 = vpow.pop %v950
      %v952 = vmul.f32 %v845, 1.442695
      %v953 = vpow.pop %v952
      %v954 = vmul.f32 %v846, 1.442695
      %v955 = vpow.pop %v954
      %v956 = vmul.f32 %v847, 1.442695
      %v957 = vpow.pop %v956
      %v958 = vmul.f32 %v848, 1.442695
      %v959 = vpow.pop %v958
      %v960 = vmul.f32 %v849, 1.442695
      %v961 = vpow.pop %v960
      %v962 = vmul.f32 %v850, 1.442695
      %v963 = vpow.pop %v962
      %v964 = vmul.f32 %v851, 1.442695
      %v965 = vpow.pop %v964
      %v966 = vmul.f32 %v852, 1.442695
      %v967 = vpow.pop %v966
      %v968 = vmul.f32 %v853, 1.442695
      %v969 = vpow.pop %v968
      %v970 = vmul.f32 %v854, 1.442695
      %v971 = vpow.pop %v970
      %v972 = vmul.f32 %v855, 1.442695
      %v973 = vpow.pop %v972
      %v974 = vmul.f32 %v856, 1.442695
      %v975 = vpow.pop %v974
      %v976 = vmul.f32 %v857, 1.442695
      %v977 = vpow.pop %v976
      %v978 = vmul.f32 %v858, 1.442695
      %v979 = vpow.pop %v978
      %v980 = vmul.f32 %v859, 1.442695
      %v981 = vpow.pop %v980
      %v982 = vmul.f32 %v860, 1.442695
      %v983 = vpow.pop %v982
      %v984 = vmul.f32 %v861, 1.442695
      %v985 = vpow.pop %v984
      %v986 = vmul.f32 %v862, 1.442695
      %v987 = vpow.pop %v986
      %v988 = vmul.f32 %v863, 1.442695
      %v989 = vpow.pop %v988
      %v990 = vmul.f32 %v864, 1.442695
      %v991 = vpow.pop %v990
      %v992 = vmul.f32 %v865, 1.442695
      %v993 = vpow.pop %v992
      %v994 = vadd.f32 %v867, 1.0
      %v995 = vadd.f32 %v869, 1.0
      %v996 = vadd.f32 %v871, 1.0
      %v997 = vadd.f32 %v873, 1.0
      %v998 = vadd.f32 %v875, 1.0
      %v999 = vadd.f32 %v877, 1.0
      %v1000 = vadd.f32 %v879, 1.0
      %v1001 = vadd.f32 %v881, 1.0
      %v1002 = vadd.f32 %v883, 1.0
      %v1003 = vadd.f32 %v885, 1.0
      %v1004 = vadd.f32 %v887, 1.0
      %v1005 = vadd.f32 %v889, 1.0
      %v1006 = vadd.f32 %v891, 1.0
      %v1007 = vadd.f32 %v893, 1.0
      %v1008 = vadd.f32 %v895, 1.0
      %v1009 = vadd.f32 %v897, 1.0
      %v1010 = vadd.f32 %v899, 1.0
      %v1011 = vadd.f32 %v901, 1.0
      %v1012 = vadd.f32 %v903, 1.0
      %v1013 = vadd.f32 %v905, 1.0
      %v1014 = vadd.f32 %v907, 1.0
      %v1015 = vadd.f32 %v909, 1.0
      %v1016 = vadd.f32 %v911, 1.0
      %v1017 = vadd.f32 %v913, 1.0
      %v1018 = vadd.f32 %v915, 1.0
      %v1019 = vadd.f32 %v917, 1.0
      %v1020 = vadd.f32 %v919, 1.0
      %v1021 = vadd.f32 %v921, 1.0
      %v1022 = vadd.f32 %v923, 1.0
      %v1023 = vadd.f32 %v925, 1.0
      %v1024 = vadd.f32 %v927, 1.0
      %v1025 = vadd.f32 %v929, 1.0
      %v1026 = vadd.f32 %v931, 1.0
      %v1027 = vadd.f32 %v933, 1.0
      %v1028 = vadd.f32 %v935, 1.0
      %v1029 = vadd.f32 %v937, 1.0
      %v1030 = vadd.f32 %v939, 1.0
      %v1031 = vadd.f32 %v941, 1.0
      %v1032 = vadd.f32 %v943, 1.0
      %v1033 = vadd.f32 %v945, 1.0
      %v1034 = vadd.f32 %v947, 1.0
      %v1035 = vadd.f32 %v949, 1.0
      %v1036 = vadd.f32 %v951, 1.0
      %v1037 = vadd.f32 %v953, 1.0
      %v1038 = vadd.f32 %v955, 1.0
      %v1039 = vadd.f32 %v957, 1.0
      %v1040 = vadd.f32 %v959, 1.0
      %v1041 = vadd.f32 %v961, 1.0
      %v1042 = vadd.f32 %v963, 1.0
      %v1043 = vadd.f32 %v965, 1.0
      %v1044 = vadd.f32 %v967, 1.0
      %v1045 = vadd.f32 %v969, 1.0
      %v1046 = vadd.f32 %v971, 1.0
      %v1047 = vadd.f32 %v973, 1.0
      %v1048 = vadd.f32 %v975, 1.0
      %v1049 = vadd.f32 %v977, 1.0
      %v1050 = vadd.f32 %v979, 1.0
      %v1051 = vadd.f32 %v981, 1.0
      %v1052 = vadd.f32 %v983, 1.0
      %v1053 = vadd.f32 %v985, 1.0
      %v1054 = vadd.f32 %v987, 1.0
      %v1055 = vadd.f32 %v989, 1.0
      %v1056 = vadd.f32 %v991, 1.0
      %v1057 = vadd.f32 %v993, 1.0
      %v1058 = vrcp.pop %v994
      %v1059 = vmul.f32 %v994, %v1058
      %v1060 = vsub.f32 1.0, %v1059
      %v1061 = vmul.f32 %v1058, %v1060
      %v1062 = vadd.f32 %v1058, %v1061
      %vm1063 = vweird.f32 %v994
      %vm1064 = vweird.f32 %v1058
      %vm1065 = vmor %vm1063, %vm1064
      %v1066 = vsel %vm1065, %v1058, %v1062
      %v1067 = vand.u32 2147483647, %v994
      %vm1068 = vcmp.eq.f32.partialorder %v1067, 8.507059e+37
      %v1069 = vand.u32 %v994, 2147483648
      %v1070 = vor.u32 1.1754944e-38, %v1069
      %v1071 = vsel %vm1068, %v1070, %v1066
      %v1072 = vmul.f32 1.0, %v1071
      %v1073 = vrcp.pop %v995
      %v1074 = vmul.f32 %v995, %v1073
      %v1075 = vsub.f32 1.0, %v1074
      %v1076 = vmul.f32 %v1073, %v1075
      %v1077 = vadd.f32 %v1073, %v1076
      %vm1078 = vweird.f32 %v995
      %vm1079 = vweird.f32 %v1073
      %vm1080 = vmor %vm1078, %vm1079
      %v1081 = vsel %vm1080, %v1073, %v1077
      %v1082 = vand.u32 2147483647, %v995
      %vm1083 = vcmp.eq.f32.partialorder %v1082, 8.507059e+37
      %v1084 = vand.u32 %v995, 2147483648
      %v1085 = vor.u32 1.1754944e-38, %v1084
      %v1086 = vsel %vm1083, %v1085, %v1081
      %v1087 = vmul.f32 1.0, %v1086
      %v1088 = vrcp.pop %v996
      %v1089 = vmul.f32 %v996, %v1088
      %v1090 = vsub.f32 1.0, %v1089
      %v1091 = vmul.f32 %v1088, %v1090
      %v1092 = vadd.f32 %v1088, %v1091
      %vm1093 = vweird.f32 %v996
      %vm1094 = vweird.f32 %v1088
      %vm1095 = vmor %vm1093, %vm1094
      %v1096 = vsel %vm1095, %v1088, %v1092
      %v1097 = vand.u32 2147483647, %v996
      %vm1098 = vcmp.eq.f32.partialorder %v1097, 8.507059e+37
      %v1099 = vand.u32 %v996, 2147483648
      %v1100 = vor.u32 1.1754944e-38, %v1099
      %v1101 = vsel %vm1098, %v1100, %v1096
      %v1102 = vmul.f32 1.0, %v1101
      %v1103 = vrcp.pop %v997
      %v1104 = vmul.f32 %v997, %v1103
      %v1105 = vsub.f32 1.0, %v1104
      %v1106 = vmul.f32 %v1103, %v1105
      %v1107 = vadd.f32 %v1103, %v1106
      %vm1108 = vweird.f32 %v997
      %vm1109 = vweird.f32 %v1103
      %vm1110 = vmor %vm1108, %vm1109
      %v1111 = vsel %vm1110, %v1103, %v1107
      %v1112 = vand.u32 2147483647, %v997
      %vm1113 = vcmp.eq.f32.partialorder %v1112, 8.507059e+37
      %v1114 = vand.u32 %v997, 2147483648
      %v1115 = vor.u32 1.1754944e-38, %v1114
      %v1116 = vsel %vm1113, %v1115, %v1111
      %v1117 = vmul.f32 1.0, %v1116
      %v1118 = vrcp.pop %v998
      %v1119 = vmul.f32 %v998, %v1118
      %v1120 = vsub.f32 1.0, %v1119
      %v1121 = vmul.f32 %v1118, %v1120
      %v1122 = vadd.f32 %v1118, %v1121
      %vm1123 = vweird.f32 %v998
      %vm1124 = vweird.f32 %v1118
      %vm1125 = vmor %vm1123, %vm1124
      %v1126 = vsel %vm1125, %v1118, %v1122
      %v1127 = vand.u32 2147483647, %v998
      %vm1128 = vcmp.eq.f32.partialorder %v1127, 8.507059e+37
      %v1129 = vand.u32 %v998, 2147483648
      %v1130 = vor.u32 1.1754944e-38, %v1129
      %v1131 = vsel %vm1128, %v1130, %v1126
      %v1132 = vmul.f32 1.0, %v1131
      %v1133 = vrcp.pop %v999
      %v1134 = vmul.f32 %v999, %v1133
      %v1135 = vsub.f32 1.0, %v1134
      %v1136 = vmul.f32 %v1133, %v1135
      %v1137 = vadd.f32 %v1133, %v1136
      %vm1138 = vweird.f32 %v999
      %vm1139 = vweird.f32 %v1133
      %vm1140 = vmor %vm1138, %vm1139
      %v1141 = vsel %vm1140, %v1133, %v1137
      %v1142 = vand.u32 2147483647, %v999
      %vm1143 = vcmp.eq.f32.partialorder %v1142, 8.507059e+37
      %v1144 = vand.u32 %v999, 2147483648
      %v1145 = vor.u32 1.1754944e-38, %v1144
      %v1146 = vsel %vm1143, %v1145, %v1141
      %v1147 = vmul.f32 1.0, %v1146
      %v1148 = vrcp.pop %v1000
      %v1149 = vmul.f32 %v1000, %v1148
      %v1150 = vsub.f32 1.0, %v1149
      %v1151 = vmul.f32 %v1148, %v1150
      %v1152 = vadd.f32 %v1148, %v1151
      %vm1153 = vweird.f32 %v1000
      %vm1154 = vweird.f32 %v1148
      %vm1155 = vmor %vm1153, %vm1154
      %v1156 = vsel %vm1155, %v1148, %v1152
      %v1157 = vand.u32 2147483647, %v1000
      %vm1158 = vcmp.eq.f32.partialorder %v1157, 8.507059e+37
      %v1159 = vand.u32 %v1000, 2147483648
      %v1160 = vor.u32 1.1754944e-38, %v1159
      %v1161 = vsel %vm1158, %v1160, %v1156
      %v1162 = vmul.f32 1.0, %v1161
      %v1163 = vrcp.pop %v1001
      %v1164 = vmul.f32 %v1001, %v1163
      %v1165 = vsub.f32 1.0, %v1164
      %v1166 = vmul.f32 %v1163, %v1165
      %v1167 = vadd.f32 %v1163, %v1166
      %vm1168 = vweird.f32 %v1001
      %vm1169 = vweird.f32 %v1163
      %vm1170 = vmor %vm1168, %vm1169
      %v1171 = vsel %vm1170, %v1163, %v1167
      %v1172 = vand.u32 2147483647, %v1001
      %vm1173 = vcmp.eq.f32.partialorder %v1172, 8.507059e+37
      %v1174 = vand.u32 %v1001, 2147483648
      %v1175 = vor.u32 1.1754944e-38, %v1174
      %v1176 = vsel %vm1173, %v1175, %v1171
      %v1177 = vmul.f32 1.0, %v1176
      %v1178 = vrcp.pop %v1002
      %v1179 = vmul.f32 %v1002, %v1178
      %v1180 = vsub.f32 1.0, %v1179
      %v1181 = vmul.f32 %v1178, %v1180
      %v1182 = vadd.f32 %v1178, %v1181
      %vm1183 = vweird.f32 %v1002
      %vm1184 = vweird.f32 %v1178
      %vm1185 = vmor %vm1183, %vm1184
      %v1186 = vsel %vm1185, %v1178, %v1182
      %v1187 = vand.u32 2147483647, %v1002
      %vm1188 = vcmp.eq.f32.partialorder %v1187, 8.507059e+37
      %v1189 = vand.u32 %v1002, 2147483648
      %v1190 = vor.u32 1.1754944e-38, %v1189
      %v1191 = vsel %vm1188, %v1190, %v1186
      %v1192 = vmul.f32 1.0, %v1191
      %v1193 = vrcp.pop %v1003
      %v1194 = vmul.f32 %v1003, %v1193
      %v1195 = vsub.f32 1.0, %v1194
      %v1196 = vmul.f32 %v1193, %v1195
      %v1197 = vadd.f32 %v1193, %v1196
      %vm1198 = vweird.f32 %v1003
      %vm1199 = vweird.f32 %v1193
      %vm1200 = vmor %vm1198, %vm1199
      %v1201 = vsel %vm1200, %v1193, %v1197
      %v1202 = vand.u32 2147483647, %v1003
      %vm1203 = vcmp.eq.f32.partialorder %v1202, 8.507059e+37
      %v1204 = vand.u32 %v1003, 2147483648
      %v1205 = vor.u32 1.1754944e-38, %v1204
      %v1206 = vsel %vm1203, %v1205, %v1201
      %v1207 = vmul.f32 1.0, %v1206
      %v1208 = vrcp.pop %v1004
      %v1209 = vmul.f32 %v1004, %v1208
      %v1210 = vsub.f32 1.0, %v1209
      %v1211 = vmul.f32 %v1208, %v1210
      %v1212 = vadd.f32 %v1208, %v1211
      %vm1213 = vweird.f32 %v1004
      %vm1214 = vweird.f32 %v1208
      %vm1215 = vmor %vm1213, %vm1214
      %v1216 = vsel %vm1215, %v1208, %v1212
      %v1217 = vand.u32 2147483647, %v1004
      %vm1218 = vcmp.eq.f32.partialorder %v1217, 8.507059e+37
      %v1219 = vand.u32 %v1004, 2147483648
      %v1220 = vor.u32 1.1754944e-38, %v1219
      %v1221 = vsel %vm1218, %v1220, %v1216
      %v1222 = vmul.f32 1.0, %v1221
      %v1223 = vrcp.pop %v1005
      %v1224 = vmul.f32 %v1005, %v1223
      %v1225 = vsub.f32 1.0, %v1224
      %v1226 = vmul.f32 %v1223, %v1225
      %v1227 = vadd.f32 %v1223, %v1226
      %vm1228 = vweird.f32 %v1005
      %vm1229 = vweird.f32 %v1223
      %vm1230 = vmor %vm1228, %vm1229
      %v1231 = vsel %vm1230, %v1223, %v1227
      %v1232 = vand.u32 2147483647, %v1005
      %vm1233 = vcmp.eq.f32.partialorder %v1232, 8.507059e+37
      %v1234 = vand.u32 %v1005, 2147483648
      %v1235 = vor.u32 1.1754944e-38, %v1234
      %v1236 = vsel %vm1233, %v1235, %v1231
      %v1237 = vmul.f32 1.0, %v1236
      %v1238 = vrcp.pop %v1006
      %v1239 = vmul.f32 %v1006, %v1238
      %v1240 = vsub.f32 1.0, %v1239
      %v1241 = vmul.f32 %v1238, %v1240
      %v1242 = vadd.f32 %v1238, %v1241
      %vm1243 = vweird.f32 %v1006
      %vm1244 = vweird.f32 %v1238
      %vm1245 = vmor %vm1243, %vm1244
      %v1246 = vsel %vm1245, %v1238, %v1242
      %v1247 = vand.u32 2147483647, %v1006
      %vm1248 = vcmp.eq.f32.partialorder %v1247, 8.507059e+37
      %v1249 = vand.u32 %v1006, 2147483648
      %v1250 = vor.u32 1.1754944e-38, %v1249
      %v1251 = vsel %vm1248, %v1250, %v1246
      %v1252 = vmul.f32 1.0, %v1251
      %v1253 = vrcp.pop %v1007
      %v1254 = vmul.f32 %v1007, %v1253
      %v1255 = vsub.f32 1.0, %v1254
      %v1256 = vmul.f32 %v1253, %v1255
      %v1257 = vadd.f32 %v1253, %v1256
      %vm1258 = vweird.f32 %v1007
      %vm1259 = vweird.f32 %v1253
      %vm1260 = vmor %vm1258, %vm1259
      %v1261 = vsel %vm1260, %v1253, %v1257
      %v1262 = vand.u32 2147483647, %v1007
      %vm1263 = vcmp.eq.f32.partialorder %v1262, 8.507059e+37
      %v1264 = vand.u32 %v1007, 2147483648
      %v1265 = vor.u32 1.1754944e-38, %v1264
      %v1266 = vsel %vm1263, %v1265, %v1261
      %v1267 = vmul.f32 1.0, %v1266
      %v1268 = vrcp.pop %v1008
      %v1269 = vmul.f32 %v1008, %v1268
      %v1270 = vsub.f32 1.0, %v1269
      %v1271 = vmul.f32 %v1268, %v1270
      %v1272 = vadd.f32 %v1268, %v1271
      %vm1273 = vweird.f32 %v1008
      %vm1274 = vweird.f32 %v1268
      %vm1275 = vmor %vm1273, %vm1274
      %v1276 = vsel %vm1275, %v1268, %v1272
      %v1277 = vand.u32 2147483647, %v1008
      %vm1278 = vcmp.eq.f32.partialorder %v1277, 8.507059e+37
      %v1279 = vand.u32 %v1008, 2147483648
      %v1280 = vor.u32 1.1754944e-38, %v1279
      %v1281 = vsel %vm1278, %v1280, %v1276
      %v1282 = vmul.f32 1.0, %v1281
      %v1283 = vrcp.pop %v1009
      %v1284 = vmul.f32 %v1009, %v1283
      %v1285 = vsub.f32 1.0, %v1284
      %v1286 = vmul.f32 %v1283, %v1285
      %v1287 = vadd.f32 %v1283, %v1286
      %vm1288 = vweird.f32 %v1009
      %vm1289 = vweird.f32 %v1283
      %vm1290 = vmor %vm1288, %vm1289
      %v1291 = vsel %vm1290, %v1283, %v1287
      %v1292 = vand.u32 2147483647, %v1009
      %vm1293 = vcmp.eq.f32.partialorder %v1292, 8.507059e+37
      %v1294 = vand.u32 %v1009, 2147483648
      %v1295 = vor.u32 1.1754944e-38, %v1294
      %v1296 = vsel %vm1293, %v1295, %v1291
      %v1297 = vmul.f32 1.0, %v1296
      %v1298 = vrcp.pop %v1010
      %v1299 = vmul.f32 %v1010, %v1298
      %v1300 = vsub.f32 1.0, %v1299
      %v1301 = vmul.f32 %v1298, %v1300
      %v1302 = vadd.f32 %v1298, %v1301
      %vm1303 = vweird.f32 %v1010
      %vm1304 = vweird.f32 %v1298
      %vm1305 = vmor %vm1303, %vm1304
      %v1306 = vsel %vm1305, %v1298, %v1302
      %v1307 = vand.u32 2147483647, %v1010
      %vm1308 = vcmp.eq.f32.partialorder %v1307, 8.507059e+37
      %v1309 = vand.u32 %v1010, 2147483648
      %v1310 = vor.u32 1.1754944e-38, %v1309
      %v1311 = vsel %vm1308, %v1310, %v1306
      %v1312 = vmul.f32 1.0, %v1311
      %v1313 = vrcp.pop %v1011
      %v1314 = vmul.f32 %v1011, %v1313
      %v1315 = vsub.f32 1.0, %v1314
      %v1316 = vmul.f32 %v1313, %v1315
      %v1317 = vadd.f32 %v1313, %v1316
      %vm1318 = vweird.f32 %v1011
      %vm1319 = vweird.f32 %v1313
      %vm1320 = vmor %vm1318, %vm1319
      %v1321 = vsel %vm1320, %v1313, %v1317
      %v1322 = vand.u32 2147483647, %v1011
      %vm1323 = vcmp.eq.f32.partialorder %v1322, 8.507059e+37
      %v1324 = vand.u32 %v1011, 2147483648
      %v1325 = vor.u32 1.1754944e-38, %v1324
      %v1326 = vsel %vm1323, %v1325, %v1321
      %v1327 = vmul.f32 1.0, %v1326
      %v1328 = vrcp.pop %v1012
      %v1329 = vmul.f32 %v1012, %v1328
      %v1330 = vsub.f32 1.0, %v1329
      %v1331 = vmul.f32 %v1328, %v1330
      %v1332 = vadd.f32 %v1328, %v1331
      %vm1333 = vweird.f32 %v1012
      %vm1334 = vweird.f32 %v1328
      %vm1335 = vmor %vm1333, %vm1334
      %v1336 = vsel %vm1335, %v1328, %v1332
      %v1337 = vand.u32 2147483647, %v1012
      %vm1338 = vcmp.eq.f32.partialorder %v1337, 8.507059e+37
      %v1339 = vand.u32 %v1012, 2147483648
      %v1340 = vor.u32 1.1754944e-38, %v1339
      %v1341 = vsel %vm1338, %v1340, %v1336
      %v1342 = vmul.f32 1.0, %v1341
      %v1343 = vrcp.pop %v1013
      %v1344 = vmul.f32 %v1013, %v1343
      %v1345 = vsub.f32 1.0, %v1344
      %v1346 = vmul.f32 %v1343, %v1345
      %v1347 = vadd.f32 %v1343, %v1346
      %vm1348 = vweird.f32 %v1013
      %vm1349 = vweird.f32 %v1343
      %vm1350 = vmor %vm1348, %vm1349
      %v1351 = vsel %vm1350, %v1343, %v1347
      %v1352 = vand.u32 2147483647, %v1013
      %vm1353 = vcmp.eq.f32.partialorder %v1352, 8.507059e+37
      %v1354 = vand.u32 %v1013, 2147483648
      %v1355 = vor.u32 1.1754944e-38, %v1354
      %v1356 = vsel %vm1353, %v1355, %v1351
      %v1357 = vmul.f32 1.0, %v1356
      %v1358 = vrcp.pop %v1014
      %v1359 = vmul.f32 %v1014, %v1358
      %v1360 = vsub.f32 1.0, %v1359
      %v1361 = vmul.f32 %v1358, %v1360
      %v1362 = vadd.f32 %v1358, %v1361
      %vm1363 = vweird.f32 %v1014
      %vm1364 = vweird.f32 %v1358
      %vm1365 = vmor %vm1363, %vm1364
      %v1366 = vsel %vm1365, %v1358, %v1362
      %v1367 = vand.u32 2147483647, %v1014
      %vm1368 = vcmp.eq.f32.partialorder %v1367, 8.507059e+37
      %v1369 = vand.u32 %v1014, 2147483648
      %v1370 = vor.u32 1.1754944e-38, %v1369
      %v1371 = vsel %vm1368, %v1370, %v1366
      %v1372 = vmul.f32 1.0, %v1371
      %v1373 = vrcp.pop %v1015
      %v1374 = vmul.f32 %v1015, %v1373
      %v1375 = vsub.f32 1.0, %v1374
      %v1376 = vmul.f32 %v1373, %v1375
      %v1377 = vadd.f32 %v1373, %v1376
      %vm1378 = vweird.f32 %v1015
      %vm1379 = vweird.f32 %v1373
      %vm1380 = vmor %vm1378, %vm1379
      %v1381 = vsel %vm1380, %v1373, %v1377
      %v1382 = vand.u32 2147483647, %v1015
      %vm1383 = vcmp.eq.f32.partialorder %v1382, 8.507059e+37
      %v1384 = vand.u32 %v1015, 2147483648
      %v1385 = vor.u32 1.1754944e-38, %v1384
      %v1386 = vsel %vm1383, %v1385, %v1381
      %v1387 = vmul.f32 1.0, %v1386
      %v1388 = vrcp.pop %v1016
      %v1389 = vmul.f32 %v1016, %v1388
      %v1390 = vsub.f32 1.0, %v1389
      %v1391 = vmul.f32 %v1388, %v1390
      %v1392 = vadd.f32 %v1388, %v1391
      %vm1393 = vweird.f32 %v1016
      %vm1394 = vweird.f32 %v1388
      %vm1395 = vmor %vm1393, %vm1394
      %v1396 = vsel %vm1395, %v1388, %v1392
      %v1397 = vand.u32 2147483647, %v1016
      %vm1398 = vcmp.eq.f32.partialorder %v1397, 8.507059e+37
      %v1399 = vand.u32 %v1016, 2147483648
      %v1400 = vor.u32 1.1754944e-38, %v1399
      %v1401 = vsel %vm1398, %v1400, %v1396
      %v1402 = vmul.f32 1.0, %v1401
      %v1403 = vrcp.pop %v1017
      %v1404 = vmul.f32 %v1017, %v1403
      %v1405 = vsub.f32 1.0, %v1404
      %v1406 = vmul.f32 %v1403, %v1405
      %v1407 = vadd.f32 %v1403, %v1406
      %vm1408 = vweird.f32 %v1017
      %vm1409 = vweird.f32 %v1403
      %vm1410 = vmor %vm1408, %vm1409
      %v1411 = vsel %vm1410, %v1403, %v1407
      %v1412 = vand.u32 2147483647, %v1017
      %vm1413 = vcmp.eq.f32.partialorder %v1412, 8.507059e+37
      %v1414 = vand.u32 %v1017, 2147483648
      %v1415 = vor.u32 1.1754944e-38, %v1414
      %v1416 = vsel %vm1413, %v1415, %v1411
      %v1417 = vmul.f32 1.0, %v1416
      %v1418 = vrcp.pop %v1018
      %v1419 = vmul.f32 %v1018, %v1418
      %v1420 = vsub.f32 1.0, %v1419
      %v1421 = vmul.f32 %v1418, %v1420
      %v1422 = vadd.f32 %v1418, %v1421
      %vm1423 = vweird.f32 %v1018
      %vm1424 = vweird.f32 %v1418
      %vm1425 = vmor %vm1423, %vm1424
      %v1426 = vsel %vm1425, %v1418, %v1422
      %v1427 = vand.u32 2147483647, %v1018
      %vm1428 = vcmp.eq.f32.partialorder %v1427, 8.507059e+37
      %v1429 = vand.u32 %v1018, 2147483648
      %v1430 = vor.u32 1.1754944e-38, %v1429
      %v1431 = vsel %vm1428, %v1430, %v1426
      %v1432 = vmul.f32 1.0, %v1431
      %v1433 = vrcp.pop %v1019
      %v1434 = vmul.f32 %v1019, %v1433
      %v1435 = vsub.f32 1.0, %v1434
      %v1436 = vmul.f32 %v1433, %v1435
      %v1437 = vadd.f32 %v1433, %v1436
      %vm1438 = vweird.f32 %v1019
      %vm1439 = vweird.f32 %v1433
      %vm1440 = vmor %vm1438, %vm1439
      %v1441 = vsel %vm1440, %v1433, %v1437
      %v1442 = vand.u32 2147483647, %v1019
      %vm1443 = vcmp.eq.f32.partialorder %v1442, 8.507059e+37
      %v1444 = vand.u32 %v1019, 2147483648
      %v1445 = vor.u32 1.1754944e-38, %v1444
      %v1446 = vsel %vm1443, %v1445, %v1441
      %v1447 = vmul.f32 1.0, %v1446
      %v1448 = vrcp.pop %v1020
      %v1449 = vmul.f32 %v1020, %v1448
      %v1450 = vsub.f32 1.0, %v1449
      %v1451 = vmul.f32 %v1448, %v1450
      %v1452 = vadd.f32 %v1448, %v1451
      %vm1453 = vweird.f32 %v1020
      %vm1454 = vweird.f32 %v1448
      %vm1455 = vmor %vm1453, %vm1454
      %v1456 = vsel %vm1455, %v1448, %v1452
      %v1457 = vand.u32 2147483647, %v1020
      %vm1458 = vcmp.eq.f32.partialorder %v1457, 8.507059e+37
      %v1459 = vand.u32 %v1020, 2147483648
      %v1460 = vor.u32 1.1754944e-38, %v1459
      %v1461 = vsel %vm1458, %v1460, %v1456
      %v1462 = vmul.f32 1.0, %v1461
      %v1463 = vrcp.pop %v1021
      %v1464 = vmul.f32 %v1021, %v1463
      %v1465 = vsub.f32 1.0, %v1464
      %v1466 = vmul.f32 %v1463, %v1465
      %v1467 = vadd.f32 %v1463, %v1466
      %vm1468 = vweird.f32 %v1021
      %vm1469 = vweird.f32 %v1463
      %vm1470 = vmor %vm1468, %vm1469
      %v1471 = vsel %vm1470, %v1463, %v1467
      %v1472 = vand.u32 2147483647, %v1021
      %vm1473 = vcmp.eq.f32.partialorder %v1472, 8.507059e+37
      %v1474 = vand.u32 %v1021, 2147483648
      %v1475 = vor.u32 1.1754944e-38, %v1474
      %v1476 = vsel %vm1473, %v1475, %v1471
      %v1477 = vmul.f32 1.0, %v1476
      %v1478 = vrcp.pop %v1022
      %v1479 = vmul.f32 %v1022, %v1478
      %v1480 = vsub.f32 1.0, %v1479
      %v1481 = vmul.f32 %v1478, %v1480
      %v1482 = vadd.f32 %v1478, %v1481
      %vm1483 = vweird.f32 %v1022
      %vm1484 = vweird.f32 %v1478
      %vm1485 = vmor %vm1483, %vm1484
      %v1486 = vsel %vm1485, %v1478, %v1482
      %v1487 = vand.u32 2147483647, %v1022
      %vm1488 = vcmp.eq.f32.partialorder %v1487, 8.507059e+37
      %v1489 = vand.u32 %v1022, 2147483648
      %v1490 = vor.u32 1.1754944e-38, %v1489
      %v1491 = vsel %vm1488, %v1490, %v1486
      %v1492 = vmul.f32 1.0, %v1491
      %v1493 = vrcp.pop %v1023
      %v1494 = vmul.f32 %v1023, %v1493
      %v1495 = vsub.f32 1.0, %v1494
      %v1496 = vmul.f32 %v1493, %v1495
      %v1497 = vadd.f32 %v1493, %v1496
      %vm1498 = vweird.f32 %v1023
      %vm1499 = vweird.f32 %v1493
      %vm1500 = vmor %vm1498, %vm1499
      %v1501 = vsel %vm1500, %v1493, %v1497
      %v1502 = vand.u32 2147483647, %v1023
      %vm1503 = vcmp.eq.f32.partialorder %v1502, 8.507059e+37
      %v1504 = vand.u32 %v1023, 2147483648
      %v1505 = vor.u32 1.1754944e-38, %v1504
      %v1506 = vsel %vm1503, %v1505, %v1501
      %v1507 = vmul.f32 1.0, %v1506
      %v1508 = vrcp.pop %v1024
      %v1509 = vmul.f32 %v1024, %v1508
      %v1510 = vsub.f32 1.0, %v1509
      %v1511 = vmul.f32 %v1508, %v1510
      %v1512 = vadd.f32 %v1508, %v1511
      %vm1513 = vweird.f32 %v1024
      %vm1514 = vweird.f32 %v1508
      %vm1515 = vmor %vm1513, %vm1514
      %v1516 = vsel %vm1515, %v1508, %v1512
      %v1517 = vand.u32 2147483647, %v1024
      %vm1518 = vcmp.eq.f32.partialorder %v1517, 8.507059e+37
      %v1519 = vand.u32 %v1024, 2147483648
      %v1520 = vor.u32 1.1754944e-38, %v1519
      %v1521 = vsel %vm1518, %v1520, %v1516
      %v1522 = vmul.f32 1.0, %v1521
      %v1523 = vrcp.pop %v1025
      %v1524 = vmul.f32 %v1025, %v1523
      %v1525 = vsub.f32 1.0, %v1524
      %v1526 = vmul.f32 %v1523, %v1525
      %v1527 = vadd.f32 %v1523, %v1526
      %vm1528 = vweird.f32 %v1025
      %vm1529 = vweird.f32 %v1523
      %vm1530 = vmor %vm1528, %vm1529
      %v1531 = vsel %vm1530, %v1523, %v1527
      %v1532 = vand.u32 2147483647, %v1025
      %vm1533 = vcmp.eq.f32.partialorder %v1532, 8.507059e+37
      %v1534 = vand.u32 %v1025, 2147483648
      %v1535 = vor.u32 1.1754944e-38, %v1534
      %v1536 = vsel %vm1533, %v1535, %v1531
      %v1537 = vmul.f32 1.0, %v1536
      %v1538 = vrcp.pop %v1026
      %v1539 = vmul.f32 %v1026, %v1538
      %v1540 = vsub.f32 1.0, %v1539
      %v1541 = vmul.f32 %v1538, %v1540
      %v1542 = vadd.f32 %v1538, %v1541
      %vm1543 = vweird.f32 %v1026
      %vm1544 = vweird.f32 %v1538
      %vm1545 = vmor %vm1543, %vm1544
      %v1546 = vsel %vm1545, %v1538, %v1542
      %v1547 = vand.u32 2147483647, %v1026
      %vm1548 = vcmp.eq.f32.partialorder %v1547, 8.507059e+37
      %v1549 = vand.u32 %v1026, 2147483648
      %v1550 = vor.u32 1.1754944e-38, %v1549
      %v1551 = vsel %vm1548, %v1550, %v1546
      %v1552 = vmul.f32 1.0, %v1551
      %v1553 = vrcp.pop %v1027
      %v1554 = vmul.f32 %v1027, %v1553
      %v1555 = vsub.f32 1.0, %v1554
      %v1556 = vmul.f32 %v1553, %v1555
      %v1557 = vadd.f32 %v1553, %v1556
      %vm1558 = vweird.f32 %v1027
      %vm1559 = vweird.f32 %v1553
      %vm1560 = vmor %vm1558, %vm1559
      %v1561 = vsel %vm1560, %v1553, %v1557
      %v1562 = vand.u32 2147483647, %v1027
      %vm1563 = vcmp.eq.f32.partialorder %v1562, 8.507059e+37
      %v1564 = vand.u32 %v1027, 2147483648
      %v1565 = vor.u32 1.1754944e-38, %v1564
      %v1566 = vsel %vm1563, %v1565, %v1561
      %v1567 = vmul.f32 1.0, %v1566
      %v1568 = vrcp.pop %v1028
      %v1569 = vmul.f32 %v1028, %v1568
      %v1570 = vsub.f32 1.0, %v1569
      %v1571 = vmul.f32 %v1568, %v1570
      %v1572 = vadd.f32 %v1568, %v1571
      %vm1573 = vweird.f32 %v1028
      %vm1574 = vweird.f32 %v1568
      %vm1575 = vmor %vm1573, %vm1574
      %v1576 = vsel %vm1575, %v1568, %v1572
      %v1577 = vand.u32 2147483647, %v1028
      %vm1578 = vcmp.eq.f32.partialorder %v1577, 8.507059e+37
      %v1579 = vand.u32 %v1028, 2147483648
      %v1580 = vor.u32 1.1754944e-38, %v1579
      %v1581 = vsel %vm1578, %v1580, %v1576
      %v1582 = vmul.f32 1.0, %v1581
      %v1583 = vrcp.pop %v1029
      %v1584 = vmul.f32 %v1029, %v1583
      %v1585 = vsub.f32 1.0, %v1584
      %v1586 = vmul.f32 %v1583, %v1585
      %v1587 = vadd.f32 %v1583, %v1586
      %vm1588 = vweird.f32 %v1029
      %vm1589 = vweird.f32 %v1583
      %vm1590 = vmor %vm1588, %vm1589
      %v1591 = vsel %vm1590, %v1583, %v1587
      %v1592 = vand.u32 2147483647, %v1029
      %vm1593 = vcmp.eq.f32.partialorder %v1592, 8.507059e+37
      %v1594 = vand.u32 %v1029, 2147483648
      %v1595 = vor.u32 1.1754944e-38, %v1594
      %v1596 = vsel %vm1593, %v1595, %v1591
      %v1597 = vmul.f32 1.0, %v1596
      %v1598 = vrcp.pop %v1030
      %v1599 = vmul.f32 %v1030, %v1598
      %v1600 = vsub.f32 1.0, %v1599
      %v1601 = vmul.f32 %v1598, %v1600
      %v1602 = vadd.f32 %v1598, %v1601
      %vm1603 = vweird.f32 %v1030
      %vm1604 = vweird.f32 %v1598
      %vm1605 = vmor %vm1603, %vm1604
      %v1606 = vsel %vm1605, %v1598, %v1602
      %v1607 = vand.u32 2147483647, %v1030
      %vm1608 = vcmp.eq.f32.partialorder %v1607, 8.507059e+37
      %v1609 = vand.u32 %v1030, 2147483648
      %v1610 = vor.u32 1.1754944e-38, %v1609
      %v1611 = vsel %vm1608, %v1610, %v1606
      %v1612 = vmul.f32 1.0, %v1611
      %v1613 = vrcp.pop %v1031
      %v1614 = vmul.f32 %v1031, %v1613
      %v1615 = vsub.f32 1.0, %v1614
      %v1616 = vmul.f32 %v1613, %v1615
      %v1617 = vadd.f32 %v1613, %v1616
      %vm1618 = vweird.f32 %v1031
      %vm1619 = vweird.f32 %v1613
      %vm1620 = vmor %vm1618, %vm1619
      %v1621 = vsel %vm1620, %v1613, %v1617
      %v1622 = vand.u32 2147483647, %v1031
      %vm1623 = vcmp.eq.f32.partialorder %v1622, 8.507059e+37
      %v1624 = vand.u32 %v1031, 2147483648
      %v1625 = vor.u32 1.1754944e-38, %v1624
      %v1626 = vsel %vm1623, %v1625, %v1621
      %v1627 = vmul.f32 1.0, %v1626
      %v1628 = vrcp.pop %v1032
      %v1629 = vmul.f32 %v1032, %v1628
      %v1630 = vsub.f32 1.0, %v1629
      %v1631 = vmul.f32 %v1628, %v1630
      %v1632 = vadd.f32 %v1628, %v1631
      %vm1633 = vweird.f32 %v1032
      %vm1634 = vweird.f32 %v1628
      %vm1635 = vmor %vm1633, %vm1634
      %v1636 = vsel %vm1635, %v1628, %v1632
      %v1637 = vand.u32 2147483647, %v1032
      %vm1638 = vcmp.eq.f32.partialorder %v1637, 8.507059e+37
      %v1639 = vand.u32 %v1032, 2147483648
      %v1640 = vor.u32 1.1754944e-38, %v1639
      %v1641 = vsel %vm1638, %v1640, %v1636
      %v1642 = vmul.f32 1.0, %v1641
      %v1643 = vrcp.pop %v1033
      %v1644 = vmul.f32 %v1033, %v1643
      %v1645 = vsub.f32 1.0, %v1644
      %v1646 = vmul.f32 %v1643, %v1645
      %v1647 = vadd.f32 %v1643, %v1646
      %vm1648 = vweird.f32 %v1033
      %vm1649 = vweird.f32 %v1643
      %vm1650 = vmor %vm1648, %vm1649
      %v1651 = vsel %vm1650, %v1643, %v1647
      %v1652 = vand.u32 2147483647, %v1033
      %vm1653 = vcmp.eq.f32.partialorder %v1652, 8.507059e+37
      %v1654 = vand.u32 %v1033, 2147483648
      %v1655 = vor.u32 1.1754944e-38, %v1654
      %v1656 = vsel %vm1653, %v1655, %v1651
      %v1657 = vmul.f32 1.0, %v1656
      %v1658 = vrcp.pop %v1034
      %v1659 = vmul.f32 %v1034, %v1658
      %v1660 = vsub.f32 1.0, %v1659
      %v1661 = vmul.f32 %v1658, %v1660
      %v1662 = vadd.f32 %v1658, %v1661
      %vm1663 = vweird.f32 %v1034
      %vm1664 = vweird.f32 %v1658
      %vm1665 = vmor %vm1663, %vm1664
      %v1666 = vsel %vm1665, %v1658, %v1662
      %v1667 = vand.u32 2147483647, %v1034
      %vm1668 = vcmp.eq.f32.partialorder %v1667, 8.507059e+37
      %v1669 = vand.u32 %v1034, 2147483648
      %v1670 = vor.u32 1.1754944e-38, %v1669
      %v1671 = vsel %vm1668, %v1670, %v1666
      %v1672 = vmul.f32 1.0, %v1671
      %v1673 = vrcp.pop %v1035
      %v1674 = vmul.f32 %v1035, %v1673
      %v1675 = vsub.f32 1.0, %v1674
      %v1676 = vmul.f32 %v1673, %v1675
      %v1677 = vadd.f32 %v1673, %v1676
      %vm1678 = vweird.f32 %v1035
      %vm1679 = vweird.f32 %v1673
      %vm1680 = vmor %vm1678, %vm1679
      %v1681 = vsel %vm1680, %v1673, %v1677
      %v1682 = vand.u32 2147483647, %v1035
      %vm1683 = vcmp.eq.f32.partialorder %v1682, 8.507059e+37
      %v1684 = vand.u32 %v1035, 2147483648
      %v1685 = vor.u32 1.1754944e-38, %v1684
      %v1686 = vsel %vm1683, %v1685, %v1681
      %v1687 = vmul.f32 1.0, %v1686
      %v1688 = vrcp.pop %v1036
      %v1689 = vmul.f32 %v1036, %v1688
      %v1690 = vsub.f32 1.0, %v1689
      %v1691 = vmul.f32 %v1688, %v1690
      %v1692 = vadd.f32 %v1688, %v1691
      %vm1693 = vweird.f32 %v1036
      %vm1694 = vweird.f32 %v1688
      %vm1695 = vmor %vm1693, %vm1694
      %v1696 = vsel %vm1695, %v1688, %v1692
      %v1697 = vand.u32 2147483647, %v1036
      %vm1698 = vcmp.eq.f32.partialorder %v1697, 8.507059e+37
      %v1699 = vand.u32 %v1036, 2147483648
      %v1700 = vor.u32 1.1754944e-38, %v1699
      %v1701 = vsel %vm1698, %v1700, %v1696
      %v1702 = vmul.f32 1.0, %v1701
      %v1703 = vrcp.pop %v1037
      %v1704 = vmul.f32 %v1037, %v1703
      %v1705 = vsub.f32 1.0, %v1704
      %v1706 = vmul.f32 %v1703, %v1705
      %v1707 = vadd.f32 %v1703, %v1706
      %vm1708 = vweird.f32 %v1037
      %vm1709 = vweird.f32 %v1703
      %vm1710 = vmor %vm1708, %vm1709
      %v1711 = vsel %vm1710, %v1703, %v1707
      %v1712 = vand.u32 2147483647, %v1037
      %vm1713 = vcmp.eq.f32.partialorder %v1712, 8.507059e+37
      %v1714 = vand.u32 %v1037, 2147483648
      %v1715 = vor.u32 1.1754944e-38, %v1714
      %v1716 = vsel %vm1713, %v1715, %v1711
      %v1717 = vmul.f32 1.0, %v1716
      %v1718 = vrcp.pop %v1038
      %v1719 = vmul.f32 %v1038, %v1718
      %v1720 = vsub.f32 1.0, %v1719
      %v1721 = vmul.f32 %v1718, %v1720
      %v1722 = vadd.f32 %v1718, %v1721
      %vm1723 = vweird.f32 %v1038
      %vm1724 = vweird.f32 %v1718
      %vm1725 = vmor %vm1723, %vm1724
      %v1726 = vsel %vm1725, %v1718, %v1722
      %v1727 = vand.u32 2147483647, %v1038
      %vm1728 = vcmp.eq.f32.partialorder %v1727, 8.507059e+37
      %v1729 = vand.u32 %v1038, 2147483648
      %v1730 = vor.u32 1.1754944e-38, %v1729
      %v1731 = vsel %vm1728, %v1730, %v1726
      %v1732 = vmul.f32 1.0, %v1731
      %v1733 = vrcp.pop %v1039
      %v1734 = vmul.f32 %v1039, %v1733
      %v1735 = vsub.f32 1.0, %v1734
      %v1736 = vmul.f32 %v1733, %v1735
      %v1737 = vadd.f32 %v1733, %v1736
      %vm1738 = vweird.f32 %v1039
      %vm1739 = vweird.f32 %v1733
      %vm1740 = vmor %vm1738, %vm1739
      %v1741 = vsel %vm1740, %v1733, %v1737
      %v1742 = vand.u32 2147483647, %v1039
      %vm1743 = vcmp.eq.f32.partialorder %v1742, 8.507059e+37
      %v1744 = vand.u32 %v1039, 2147483648
      %v1745 = vor.u32 1.1754944e-38, %v1744
      %v1746 = vsel %vm1743, %v1745, %v1741
      %v1747 = vmul.f32 1.0, %v1746
      %v1748 = vrcp.pop %v1040
      %v1749 = vmul.f32 %v1040, %v1748
      %v1750 = vsub.f32 1.0, %v1749
      %v1751 = vmul.f32 %v1748, %v1750
      %v1752 = vadd.f32 %v1748, %v1751
      %vm1753 = vweird.f32 %v1040
      %vm1754 = vweird.f32 %v1748
      %vm1755 = vmor %vm1753, %vm1754
      %v1756 = vsel %vm1755, %v1748, %v1752
      %v1757 = vand.u32 2147483647, %v1040
      %vm1758 = vcmp.eq.f32.partialorder %v1757, 8.507059e+37
      %v1759 = vand.u32 %v1040, 2147483648
      %v1760 = vor.u32 1.1754944e-38, %v1759
      %v1761 = vsel %vm1758, %v1760, %v1756
      %v1762 = vmul.f32 1.0, %v1761
      %v1763 = vrcp.pop %v1041
      %v1764 = vmul.f32 %v1041, %v1763
      %v1765 = vsub.f32 1.0, %v1764
      %v1766 = vmul.f32 %v1763, %v1765
      %v1767 = vadd.f32 %v1763, %v1766
      %vm1768 = vweird.f32 %v1041
      %vm1769 = vweird.f32 %v1763
      %vm1770 = vmor %vm1768, %vm1769
      %v1771 = vsel %vm1770, %v1763, %v1767
      %v1772 = vand.u32 2147483647, %v1041
      %vm1773 = vcmp.eq.f32.partialorder %v1772, 8.507059e+37
      %v1774 = vand.u32 %v1041, 2147483648
      %v1775 = vor.u32 1.1754944e-38, %v1774
      %v1776 = vsel %vm1773, %v1775, %v1771
      %v1777 = vmul.f32 1.0, %v1776
      %v1778 = vrcp.pop %v1042
      %v1779 = vmul.f32 %v1042, %v1778
      %v1780 = vsub.f32 1.0, %v1779
      %v1781 = vmul.f32 %v1778, %v1780
      %v1782 = vadd.f32 %v1778, %v1781
      %vm1783 = vweird.f32 %v1042
      %vm1784 = vweird.f32 %v1778
      %vm1785 = vmor %vm1783, %vm1784
      %v1786 = vsel %vm1785, %v1778, %v1782
      %v1787 = vand.u32 2147483647, %v1042
      %vm1788 = vcmp.eq.f32.partialorder %v1787, 8.507059e+37
      %v1789 = vand.u32 %v1042, 2147483648
      %v1790 = vor.u32 1.1754944e-38, %v1789
      %v1791 = vsel %vm1788, %v1790, %v1786
      %v1792 = vmul.f32 1.0, %v1791
      %v1793 = vrcp.pop %v1043
      %v1794 = vmul.f32 %v1043, %v1793
      %v1795 = vsub.f32 1.0, %v1794
      %v1796 = vmul.f32 %v1793, %v1795
      %v1797 = vadd.f32 %v1793, %v1796
      %vm1798 = vweird.f32 %v1043
      %vm1799 = vweird.f32 %v1793
      %vm1800 = vmor %vm1798, %vm1799
      %v1801 = vsel %vm1800, %v1793, %v1797
      %v1802 = vand.u32 2147483647, %v1043
      %vm1803 = vcmp.eq.f32.partialorder %v1802, 8.507059e+37
      %v1804 = vand.u32 %v1043, 2147483648
      %v1805 = vor.u32 1.1754944e-38, %v1804
      %v1806 = vsel %vm1803, %v1805, %v1801
      %v1807 = vmul.f32 1.0, %v1806
      %v1808 = vrcp.pop %v1044
      %v1809 = vmul.f32 %v1044, %v1808
      %v1810 = vsub.f32 1.0, %v1809
      %v1811 = vmul.f32 %v1808, %v1810
      %v1812 = vadd.f32 %v1808, %v1811
      %vm1813 = vweird.f32 %v1044
      %vm1814 = vweird.f32 %v1808
      %vm1815 = vmor %vm1813, %vm1814
      %v1816 = vsel %vm1815, %v1808, %v1812
      %v1817 = vand.u32 2147483647, %v1044
      %vm1818 = vcmp.eq.f32.partialorder %v1817, 8.507059e+37
      %v1819 = vand.u32 %v1044, 2147483648
      %v1820 = vor.u32 1.1754944e-38, %v1819
      %v1821 = vsel %vm1818, %v1820, %v1816
      %v1822 = vmul.f32 1.0, %v1821
      %v1823 = vrcp.pop %v1045
      %v1824 = vmul.f32 %v1045, %v1823
      %v1825 = vsub.f32 1.0, %v1824
      %v1826 = vmul.f32 %v1823, %v1825
      %v1827 = vadd.f32 %v1823, %v1826
      %vm1828 = vweird.f32 %v1045
      %vm1829 = vweird.f32 %v1823
      %vm1830 = vmor %vm1828, %vm1829
      %v1831 = vsel %vm1830, %v1823, %v1827
      %v1832 = vand.u32 2147483647, %v1045
      %vm1833 = vcmp.eq.f32.partialorder %v1832, 8.507059e+37
      %v1834 = vand.u32 %v1045, 2147483648
      %v1835 = vor.u32 1.1754944e-38, %v1834
      %v1836 = vsel %vm1833, %v1835, %v1831
      %v1837 = vmul.f32 1.0, %v1836
      %v1838 = vrcp.pop %v1046
      %v1839 = vmul.f32 %v1046, %v1838
      %v1840 = vsub.f32 1.0, %v1839
      %v1841 = vmul.f32 %v1838, %v1840
      %v1842 = vadd.f32 %v1838, %v1841
      %vm1843 = vweird.f32 %v1046
      %vm1844 = vweird.f32 %v1838
      %vm1845 = vmor %vm1843, %vm1844
      %v1846 = vsel %vm1845, %v1838, %v1842
      %v1847 = vand.u32 2147483647, %v1046
      %vm1848 = vcmp.eq.f32.partialorder %v1847, 8.507059e+37
      %v1849 = vand.u32 %v1046, 2147483648
      %v1850 = vor.u32 1.1754944e-38, %v1849
      %v1851 = vsel %vm1848, %v1850, %v1846
      %v1852 = vmul.f32 1.0, %v1851
      %v1853 = vrcp.pop %v1047
      %v1854 = vmul.f32 %v1047, %v1853
      %v1855 = vsub.f32 1.0, %v1854
      %v1856 = vmul.f32 %v1853, %v1855
      %v1857 = vadd.f32 %v1853, %v1856
      %vm1858 = vweird.f32 %v1047
      %vm1859 = vweird.f32 %v1853
      %vm1860 = vmor %vm1858, %vm1859
      %v1861 = vsel %vm1860, %v1853, %v1857
      %v1862 = vand.u32 2147483647, %v1047
      %vm1863 = vcmp.eq.f32.partialorder %v1862, 8.507059e+37
      %v1864 = vand.u32 %v1047, 2147483648
      %v1865 = vor.u32 1.1754944e-38, %v1864
      %v1866 = vsel %vm1863, %v1865, %v1861
      %v1867 = vmul.f32 1.0, %v1866
      %v1868 = vrcp.pop %v1048
      %v1869 = vmul.f32 %v1048, %v1868
      %v1870 = vsub.f32 1.0, %v1869
      %v1871 = vmul.f32 %v1868, %v1870
      %v1872 = vadd.f32 %v1868, %v1871
      %vm1873 = vweird.f32 %v1048
      %vm1874 = vweird.f32 %v1868
      %vm1875 = vmor %vm1873, %vm1874
      %v1876 = vsel %vm1875, %v1868, %v1872
      %v1877 = vand.u32 2147483647, %v1048
      %vm1878 = vcmp.eq.f32.partialorder %v1877, 8.507059e+37
      %v1879 = vand.u32 %v1048, 2147483648
      %v1880 = vor.u32 1.1754944e-38, %v1879
      %v1881 = vsel %vm1878, %v1880, %v1876
      %v1882 = vmul.f32 1.0, %v1881
      %v1883 = vrcp.pop %v1049
      %v1884 = vmul.f32 %v1049, %v1883
      %v1885 = vsub.f32 1.0, %v1884
      %v1886 = vmul.f32 %v1883, %v1885
      %v1887 = vadd.f32 %v1883, %v1886
      %vm1888 = vweird.f32 %v1049
      %vm1889 = vweird.f32 %v1883
      %vm1890 = vmor %vm1888, %vm1889
      %v1891 = vsel %vm1890, %v1883, %v1887
      %v1892 = vand.u32 2147483647, %v1049
      %vm1893 = vcmp.eq.f32.partialorder %v1892, 8.507059e+37
      %v1894 = vand.u32 %v1049, 2147483648
      %v1895 = vor.u32 1.1754944e-38, %v1894
      %v1896 = vsel %vm1893, %v1895, %v1891
      %v1897 = vmul.f32 1.0, %v1896
      %v1898 = vrcp.pop %v1050
      %v1899 = vmul.f32 %v1050, %v1898
      %v1900 = vsub.f32 1.0, %v1899
      %v1901 = vmul.f32 %v1898, %v1900
      %v1902 = vadd.f32 %v1898, %v1901
      %vm1903 = vweird.f32 %v1050
      %vm1904 = vweird.f32 %v1898
      %vm1905 = vmor %vm1903, %vm1904
      %v1906 = vsel %vm1905, %v1898, %v1902
      %v1907 = vand.u32 2147483647, %v1050
      %vm1908 = vcmp.eq.f32.partialorder %v1907, 8.507059e+37
      %v1909 = vand.u32 %v1050, 2147483648
      %v1910 = vor.u32 1.1754944e-38, %v1909
      %v1911 = vsel %vm1908, %v1910, %v1906
      %v1912 = vmul.f32 1.0, %v1911
      %v1913 = vrcp.pop %v1051
      %v1914 = vmul.f32 %v1051, %v1913
      %v1915 = vsub.f32 1.0, %v1914
      %v1916 = vmul.f32 %v1913, %v1915
      %v1917 = vadd.f32 %v1913, %v1916
      %vm1918 = vweird.f32 %v1051
      %vm1919 = vweird.f32 %v1913
      %vm1920 = vmor %vm1918, %vm1919
      %v1921 = vsel %vm1920, %v1913, %v1917
      %v1922 = vand.u32 2147483647, %v1051
      %vm1923 = vcmp.eq.f32.partialorder %v1922, 8.507059e+37
      %v1924 = vand.u32 %v1051, 2147483648
      %v1925 = vor.u32 1.1754944e-38, %v1924
      %v1926 = vsel %vm1923, %v1925, %v1921
      %v1927 = vmul.f32 1.0, %v1926
      %v1928 = vrcp.pop %v1052
      %v1929 = vmul.f32 %v1052, %v1928
      %v1930 = vsub.f32 1.0, %v1929
      %v1931 = vmul.f32 %v1928, %v1930
      %v1932 = vadd.f32 %v1928, %v1931
      %vm1933 = vweird.f32 %v1052
      %vm1934 = vweird.f32 %v1928
      %vm1935 = vmor %vm1933, %vm1934
      %v1936 = vsel %vm1935, %v1928, %v1932
      %v1937 = vand.u32 2147483647, %v1052
      %vm1938 = vcmp.eq.f32.partialorder %v1937, 8.507059e+37
      %v1939 = vand.u32 %v1052, 2147483648
      %v1940 = vor.u32 1.1754944e-38, %v1939
      %v1941 = vsel %vm1938, %v1940, %v1936
      %v1942 = vmul.f32 1.0, %v1941
      %v1943 = vrcp.pop %v1053
      %v1944 = vmul.f32 %v1053, %v1943
      %v1945 = vsub.f32 1.0, %v1944
      %v1946 = vmul.f32 %v1943, %v1945
      %v1947 = vadd.f32 %v1943, %v1946
      %vm1948 = vweird.f32 %v1053
      %vm1949 = vweird.f32 %v1943
      %vm1950 = vmor %vm1948, %vm1949
      %v1951 = vsel %vm1950, %v1943, %v1947
      %v1952 = vand.u32 2147483647, %v1053
      %vm1953 = vcmp.eq.f32.partialorder %v1952, 8.507059e+37
      %v1954 = vand.u32 %v1053, 2147483648
      %v1955 = vor.u32 1.1754944e-38, %v1954
      %v1956 = vsel %vm1953, %v1955, %v1951
      %v1957 = vmul.f32 1.0, %v1956
      %v1958 = vrcp.pop %v1054
      %v1959 = vmul.f32 %v1054, %v1958
      %v1960 = vsub.f32 1.0, %v1959
      %v1961 = vmul.f32 %v1958, %v1960
      %v1962 = vadd.f32 %v1958, %v1961
      %vm1963 = vweird.f32 %v1054
      %vm1964 = vweird.f32 %v1958
      %vm1965 = vmor %vm1963, %vm1964
      %v1966 = vsel %vm1965, %v1958, %v1962
      %v1967 = vand.u32 2147483647, %v1054
      %vm1968 = vcmp.eq.f32.partialorder %v1967, 8.507059e+37
      %v1969 = vand.u32 %v1054, 2147483648
      %v1970 = vor.u32 1.1754944e-38, %v1969
      %v1971 = vsel %vm1968, %v1970, %v1966
      %v1972 = vmul.f32 1.0, %v1971
      %v1973 = vrcp.pop %v1055
      %v1974 = vmul.f32 %v1055, %v1973
      %v1975 = vsub.f32 1.0, %v1974
      %v1976 = vmul.f32 %v1973, %v1975
      %v1977 = vadd.f32 %v1973, %v1976
      %vm1978 = vweird.f32 %v1055
      %vm1979 = vweird.f32 %v1973
      %vm1980 = vmor %vm1978, %vm1979
      %v1981 = vsel %vm1980, %v1973, %v1977
      %v1982 = vand.u32 2147483647, %v1055
      %vm1983 = vcmp.eq.f32.partialorder %v1982, 8.507059e+37
      %v1984 = vand.u32 %v1055, 2147483648
      %v1985 = vor.u32 1.1754944e-38, %v1984
      %v1986 = vsel %vm1983, %v1985, %v1981
      %v1987 = vmul.f32 1.0, %v1986
      %v1988 = vrcp.pop %v1056
      %v1989 = vmul.f32 %v1056, %v1988
      %v1990 = vsub.f32 1.0, %v1989
      %v1991 = vmul.f32 %v1988, %v1990
      %v1992 = vadd.f32 %v1988, %v1991
      %vm1993 = vweird.f32 %v1056
      %vm1994 = vweird.f32 %v1988
      %vm1995 = vmor %vm1993, %vm1994
      %v1996 = vsel %vm1995, %v1988, %v1992
      %v1997 = vand.u32 2147483647, %v1056
      %vm1998 = vcmp.eq.f32.partialorder %v1997, 8.507059e+37
      %v1999 = vand.u32 %v1056, 2147483648
      %v2000 = vor.u32 1.1754944e-38, %v1999
      %v2001 = vsel %vm1998, %v2000, %v1996
      %v2002 = vmul.f32 1.0, %v2001
      %v2003 = vrcp.pop %v1057
      %v2004 = vmul.f32 %v1057, %v2003
      %v2005 = vsub.f32 1.0, %v2004
      %v2006 = vmul.f32 %v2003, %v2005
      %v2007 = vadd.f32 %v2003, %v2006
      %vm2008 = vweird.f32 %v1057
      %vm2009 = vweird.f32 %v2003
      %vm2010 = vmor %vm2008, %vm2009
      %v2011 = vsel %vm2010, %v2003, %v2007
      %v2012 = vand.u32 2147483647, %v1057
      %vm2013 = vcmp.eq.f32.partialorder %v2012, 8.507059e+37
      %v2014 = vand.u32 %v1057, 2147483648
      %v2015 = vor.u32 1.1754944e-38, %v2014
      %v2016 = vsel %vm2013, %v2015, %v2011
      %v2017 = vmul.f32 1.0, %v2016
      %v2018 = vmul.f32 %v738, %v1072
      %v2019 = vmul.f32 %v739, %v1087
      %v2020 = vmul.f32 %v740, %v1102
      %v2021 = vmul.f32 %v741, %v1117
      %v2022 = vmul.f32 %v742, %v1132
      %v2023 = vmul.f32 %v743, %v1147
      %v2024 = vmul.f32 %v744, %v1162
      %v2025 = vmul.f32 %v745, %v1177
      %v2026 = vmul.f32 %v746, %v1192
      %v2027 = vmul.f32 %v747, %v1207
      %v2028 = vmul.f32 %v748, %v1222
      %v2029 = vmul.f32 %v749, %v1237
      %v2030 = vmul.f32 %v750, %v1252
      %v2031 = vmul.f32 %v751, %v1267
      %v2032 = vmul.f32 %v752, %v1282
      %v2033 = vmul.f32 %v753, %v1297
      %v2034 = vmul.f32 %v754, %v1312
      %v2035 = vmul.f32 %v755, %v1327
      %v2036 = vmul.f32 %v756, %v1342
      %v2037 = vmul.f32 %v757, %v1357
      %v2038 = vmul.f32 %v758, %v1372
      %v2039 = vmul.f32 %v759, %v1387
      %v2040 = vmul.f32 %v760, %v1402
      %v2041 = vmul.f32 %v761, %v1417
      %v2042 = vmul.f32 %v762, %v1432
      %v2043 = vmul.f32 %v763, %v1447
      %v2044 = vmul.f32 %v764, %v1462
      %v2045 = vmul.f32 %v765, %v1477
      %v2046 = vmul.f32 %v766, %v1492
      %v2047 = vmul.f32 %v767, %v1507
      %v2048 = vmul.f32 %v768, %v1522
      %v2049 = vmul.f32 %v769, %v1537
      %v2050 = vmul.f32 %v770, %v1552
      %v2051 = vmul.f32 %v771, %v1567
      %v2052 = vmul.f32 %v772, %v1582
      %v2053 = vmul.f32 %v773, %v1597
      %v2054 = vmul.f32 %v774, %v1612
      %v2055 = vmul.f32 %v775, %v1627
      %v2056 = vmul.f32 %v776, %v1642
      %v2057 = vmul.f32 %v777, %v1657
      %v2058 = vmul.f32 %v778, %v1672
      %v2059 = vmul.f32 %v779, %v1687
      %v2060 = vmul.f32 %v780, %v1702
      %v2061 = vmul.f32 %v781, %v1717
      %v2062 = vmul.f32 %v782, %v1732
      %v2063 = vmul.f32 %v783, %v1747
      %v2064 = vmul.f32 %v784, %v1762
      %v2065 = vmul.f32 %v785, %v1777
      %v2066 = vmul.f32 %v786, %v1792
      %v2067 = vmul.f32 %v787, %v1807
      %v2068 = vmul.f32 %v788, %v1822
      %v2069 = vmul.f32 %v789, %v1837
      %v2070 = vmul.f32 %v790, %v1852
      %v2071 = vmul.f32 %v791, %v1867
      %v2072 = vmul.f32 %v792, %v1882
      %v2073 = vmul.f32 %v793, %v1897
      %v2074 = vmul.f32 %v794, %v1912
      %v2075 = vmul.f32 %v795, %v1927
      %v2076 = vmul.f32 %v796, %v1942
      %v2077 = vmul.f32 %v797, %v1957
      %v2078 = vmul.f32 %v798, %v1972
      %v2079 = vmul.f32 %v799, %v1987
      %v2080 = vmul.f32 %v800, %v2002
      %v2081 = vmul.f32 %v801, %v2017
      %2082 = vst [vmem:[#allocation8] sm:$0xff] %v2018
      %2083 = vst [vmem:[#allocation8 + $0x8] sm:$0xff] %v2019
      %2084 = vst [vmem:[#allocation8 + $0x10] sm:$0xff] %v2020
      %2085 = vst [vmem:[#allocation8 + $0x18] sm:$0xff] %v2021
      %2086 = vst [vmem:[#allocation8 + $0x20] sm:$0xff] %v2022
      %2087 = vst [vmem:[#allocation8 + $0x28] sm:$0xff] %v2023
      %2088 = vst [vmem:[#allocation8 + $0x30] sm:$0xff] %v2024
      %2089 = vst [vmem:[#allocation8 + $0x38] sm:$0xff] %v2025
      %2090 = vst [vmem:[#allocation8 + $0x40] sm:$0xff] %v2026
      %2091 = vst [vmem:[#allocation8 + $0x48] sm:$0xff] %v2027
      %2092 = vst [vmem:[#allocation8 + $0x50] sm:$0xff] %v2028
      %2093 = vst [vmem:[#allocation8 + $0x58] sm:$0xff] %v2029
      %2094 = vst [vmem:[#allocation8 + $0x60] sm:$0xff] %v2030
      %2095 = vst [vmem:[#allocation8 + $0x68] sm:$0xff] %v2031
      %2096 = vst [vmem:[#allocation8 + $0x70] sm:$0xff] %v2032
      %2097 = vst [vmem:[#allocation8 + $0x78] sm:$0xff] %v2033
      %2098 = vst [vmem:[#allocation8 + $0x80] sm:$0xff] %v2034
      %2099 = vst [vmem:[#allocation8 + $0x88] sm:$0xff] %v2035
      %2100 = vst [vmem:[#allocation8 + $0x90] sm:$0xff] %v2036
      %2101 = vst [vmem:[#allocation8 + $0x98] sm:$0xff] %v2037
      %2102 = vst [vmem:[#allocation8 + $0xa0] sm:$0xff] %v2038
      %2103 = vst [vmem:[#allocation8 + $0xa8] sm:$0xff] %v2039
      %2104 = vst [vmem:[#allocation8 + $0xb0] sm:$0xff] %v2040
      %2105 = vst [vmem:[#allocation8 + $0xb8] sm:$0xff] %v2041
      %2106 = vst [vmem:[#allocation8 + $0xc0] sm:$0xff] %v2042
      %2107 = vst [vmem:[#allocation8 + $0xc8] sm:$0xff] %v2043
      %2108 = vst [vmem:[#allocation8 + $0xd0] sm:$0xff] %v2044
      %2109 = vst [vmem:[#allocation8 + $0xd8] sm:$0xff] %v2045
      %2110 = vst [vmem:[#allocation8 + $0xe0] sm:$0xff] %v2046
      %2111 = vst [vmem:[#allocation8 + $0xe8] sm:$0xff] %v2047
      %2112 = vst [vmem:[#allocation8 + $0xf0] sm:$0xff] %v2048
      %2113 = vst [vmem:[#allocation8 + $0xf8] sm:$0xff] %v2049
      %2114 = vst [vmem:[#allocation8 + $0x100] sm:$0xff] %v2050
      %2115 = vst [vmem:[#allocation8 + $0x108] sm:$0xff] %v2051
      %2116 = vst [vmem:[#allocation8 + $0x110] sm:$0xff] %v2052
      %2117 = vst [vmem:[#allocation8 + $0x118] sm:$0xff] %v2053
      %2118 = vst [vmem:[#allocation8 + $0x120] sm:$0xff] %v2054
      %2119 = vst [vmem:[#allocation8 + $0x128] sm:$0xff] %v2055
      %2120 = vst [vmem:[#allocation8 + $0x130] sm:$0xff] %v2056
      %2121 = vst [vmem:[#allocation8 + $0x138] sm:$0xff] %v2057
      %2122 = vst [vmem:[#allocation8 + $0x140] sm:$0xff] %v2058
      %2123 = vst [vmem:[#allocation8 + $0x148] sm:$0xff] %v2059
      %2124 = vst [vmem:[#allocation8 + $0x150] sm:$0xff] %v2060
      %2125 = vst [vmem:[#allocation8 + $0x158] sm:$0xff] %v2061
      %2126 = vst [vmem:[#allocation8 + $0x160] sm:$0xff] %v2062
      %2127 = vst [vmem:[#allocation8 + $0x168] sm:$0xff] %v2063
      %2128 = vst [vmem:[#allocation8 + $0x170] sm:$0xff] %v2064
      %2129 = vst [vmem:[#allocation8 + $0x178] sm:$0xff] %v2065
      %2130 = vst [vmem:[#allocation8 + $0x180] sm:$0xff] %v2066
      %2131 = vst [vmem:[#allocation8 + $0x188] sm:$0xff] %v2067
      %2132 = vst [vmem:[#allocation8 + $0x190] sm:$0xff] %v2068
      %2133 = vst [vmem:[#allocation8 + $0x198] sm:$0xff] %v2069
      %2134 = vst [vmem:[#allocation8 + $0x1a0] sm:$0xff] %v2070
      %2135 = vst [vmem:[#allocation8 + $0x1a8] sm:$0xff] %v2071
      %2136 = vst [vmem:[#allocation8 + $0x1b0] sm:$0xff] %v2072
      %2137 = vst [vmem:[#allocation8 + $0x1b8] sm:$0xff] %v2073
      %2138 = vst [vmem:[#allocation8 + $0x1c0] sm:$0xff] %v2074
      %2139 = vst [vmem:[#allocation8 + $0x1c8] sm:$0xff] %v2075
      %2140 = vst [vmem:[#allocation8 + $0x1d0] sm:$0xff] %v2076
      %2141 = vst [vmem:[#allocation8 + $0x1d8] sm:$0xff] %v2077
      %2142 = vst [vmem:[#allocation8 + $0x1e0] sm:$0xff] %v2078
      %2143 = vst [vmem:[#allocation8 + $0x1e8] sm:$0xff] %v2079
      %2144 = vst [vmem:[#allocation8 + $0x1f0] sm:$0xff] %v2080
      %2145 = vst [vmem:[#allocation8 + $0x1f8] sm:$0xff] %v2081
    $region33: #{tpu_custom_call.1} parent=1 // pred_fallthru
      _
    // Predicated region
    $region34: #{tpu_custom_call.1} parent=1 // pred_check
      _
    $region35: #{tpu_custom_call.1} parent=1 // pred_check_branch
      %2147 = sbr.rel (0) target = $region37
    $region36: #{tpu_custom_call.1} parent=1 // pred_region
      %2149 = vsyncadd [#allocation5], 0
      %s2150 = sshll.u32 [#allocation8], 4
      %s2151 = int_to_ptr.vmem [resolvable:$true] %s2150
      %s2152 = sshll.u32 %s4, 4
      %s2153 = int_to_ptr.hbm [resolvable:$true] %s2152
      %2158 = dma.vmem_to_hbm [thread:$0]  %s2151, 8192, %s2153, [#allocation5], 128, 128, 8
    $region37: #{tpu_custom_call.1} parent=1 // pred_fallthru
      _
    // Predicated region
    $region38: #{tpu_custom_call.1} parent=1 // pred_check
      _
    $region39: #{tpu_custom_call.1} parent=1 // pred_check_branch
      %2160 = sbr.rel (0) target = $region41
    $region40: #{tpu_custom_call.1} parent=1 // pred_region
      %2162 = dma.done [#allocation5], 8192
    $region41: #{tpu_custom_call.1} parent=1 // pred_fallthru
      _
    %2163 = vsyncpa [#allocation4], 1
    %2164 = vsyncpa [#allocation7], 1
    %2165 = vsyncpa [#allocation5], 1

</llo_original>
